<compile_context>
chip_gen: v7x
topology: tpu7x:2x2x1
jax: 0.10.0
libtpu: 0.0.40
codegen_flags: <defaults>
</compile_context>

<pallas_src>
import jax
import jax.numpy as jnp
from jax import lax
from jax.experimental import pallas as pl
from jax.experimental.pallas import tpu as pltpu


_UNROLL_MAX_T = 32  # fully unroll short time loops at trace time (LLO visibility)


def _loop_over_time(T, body, carry):
    """carry = body(t, carry) for t in [0, T). Unrolled for short T, fori_loop otherwise."""
    if T <= _UNROLL_MAX_T:
        for t in range(T):
            carry = body(t, carry)
        return carry
    return lax.fori_loop(0, T, body, carry)


def _gate_update(pre, c_prev, n):
    """LSTM gate math, PyTorch gate order (i, f, g, o). pre:(B,4n), c_prev:(B,n)."""
    i = jax.nn.sigmoid(pre[:, 0:n])
    f = jax.nn.sigmoid(pre[:, n:2 * n])
    g = jnp.tanh(pre[:, 2 * n:3 * n])
    o = jax.nn.sigmoid(pre[:, 3 * n:4 * n])
    c = f * c_prev + i * g
    h = o * jnp.tanh(c)
    return h, c


def _lstmae_kernel(x_ref, ewih_ref, ewhh_ref, eb_ref,
                   dwih_ref, dwhh_ref, db_ref,
                   y_ref, exg_scr, y_scr):
    # x_ref: (bt, T, Din) batch tile; y_ref: (bt, T, Dout) reconstructed tile.
    bt, T, Din = x_ref.shape
    H = ewhh_ref.shape[0]        # encoder hidden size
    Dout = dwhh_ref.shape[0]     # decoder hidden size == input_dim

    # ---- Encoder input projection, hoisted out of the recurrence (one big matmul,
    # bias folded in). Rows are batch-major: row index r = b*T + t. --------------
    x2 = x_ref[...].reshape(bt * T, Din)
    exg_scr[...] = (jnp.dot(x2, ewih_ref[...], preferred_element_type=jnp.float32)
                    + eb_ref[...])

    ewhh = ewhh_ref[...]         # hoist weight loads out of the time loop

    def enc_step(t, carry):
        h, c = carry
        # Gather this step's precomputed input gates for every batch row (b*T + t).
        gx = jnp.concatenate(
            [exg_scr[pl.ds(b * T + t, 1), :] for b in range(bt)], axis=0)
        pre = gx + jnp.dot(h, ewhh, preferred_element_type=jnp.float32)
        return _gate_update(pre, c, H)

    h0 = jnp.zeros((bt, H), jnp.float32)
    c0 = jnp.zeros((bt, H), jnp.float32)
    h_enc, _ = _loop_over_time(T, enc_step, (h0, c0))

    # ---- Decoder: its input (encoder final hidden, repeated over time) is constant,
    # so the input projection is computed exactly once. --------------------------
    dgx = (jnp.dot(h_enc, dwih_ref[...], preferred_element_type=jnp.float32)
           + db_ref[...])        # (bt, 4*Dout), loop-invariant
    dwhh = dwhh_ref[...]

    def dec_step(t, carry):
        h, c = carry
        pre = dgx + jnp.dot(h, dwhh, preferred_element_type=jnp.float32)
        h, c = _gate_update(pre, c, Dout)
        # Stage the step output in VMEM (batch-major rows, r = b*T + t); the HBM
        # writeback happens once, after the loop.
        for b in range(bt):
            y_scr[pl.ds(b * T + t, 1), :] = h[b:b + 1, :]
        return h, c

    dh0 = jnp.zeros((bt, Dout), jnp.float32)
    dc0 = jnp.zeros((bt, Dout), jnp.float32)
    _loop_over_time(T, dec_step, (dh0, dc0))

    # ---- Single writeback of the whole reconstructed block ----------------------
    y_ref[...] = y_scr[...].reshape(bt, T, Dout)


# ------------------------------- host-side wrapper ---------------------------------

def lstmae_forward(x, params, *, batch_block=None):
    """Full LSTMAE forward: x:(B, T, Din) -> reconstructed:(B, T, Din)."""
    B, T, Din = x.shape
    H = params["enc_whh_T"].shape[0]
    Dout = params["dec_whh_T"].shape[0]

    bt = B if batch_block is None else batch_block
    assert B % bt == 0, "batch_block must divide the batch size"
    grid = (B // bt,)

    return pl.pallas_call(
        _lstmae_kernel,
        out_shape=jax.ShapeDtypeStruct((B, T, Dout), jnp.float32),
        grid_spec=pltpu.PrefetchScalarGridSpec(
            num_scalar_prefetch=0,
            grid=grid,
            in_specs=[
                pl.BlockSpec((bt, T, Din), lambda i: (i, 0, 0)),     # x (batch tile)
                pl.BlockSpec((Din, 4 * H), lambda i: (0, 0)),        # enc W_ih^T
                pl.BlockSpec((H, 4 * H), lambda i: (0, 0)),          # enc W_hh^T
                pl.BlockSpec((1, 4 * H), lambda i: (0, 0)),          # enc bias (ih+hh)
                pl.BlockSpec((H, 4 * Dout), lambda i: (0, 0)),       # dec W_ih^T
                pl.BlockSpec((Dout, 4 * Dout), lambda i: (0, 0)),    # dec W_hh^T
                pl.BlockSpec((1, 4 * Dout), lambda i: (0, 0)),       # dec bias (ih+hh)
            ],
            out_specs=pl.BlockSpec((bt, T, Dout), lambda i: (i, 0, 0)),
            scratch_shapes=[
                pltpu.VMEM((bt * T, 4 * H), jnp.float32),   # hoisted encoder input gates
                pltpu.VMEM((bt * T, Dout), jnp.float32),    # staged decoder outputs
            ],
        ),
        compiler_params=pltpu.CompilerParams(
            # Batch tiles are fully independent; the time recurrence lives inside the
            # kernel so there is no sequential grid axis at all.
            dimension_semantics=("parallel",)),
    )(x, params["enc_wih_T"], params["enc_whh_T"], params["enc_b"],
      params["dec_wih_T"], params["dec_whh_T"], params["dec_b"])


# ------------------------------- parameter init -------------------------------------

def init_params(key, input_dim, hidden_dim):
    """Deterministic PyTorch-style LSTM init: U(-1/sqrt(H), 1/sqrt(H))."""
    def u(k, shape, bound):
        return jax.random.uniform(k, shape, jnp.float32, -bound, bound)

    k_enc = 1.0 / float(hidden_dim) ** 0.5
    k_dec = 1.0 / float(input_dim) ** 0.5
    ks = jax.random.split(key, 8)
    # PyTorch stores W_ih:(4H, Din), W_hh:(4H, H); we keep transposed copies.
    enc_wih = u(ks[0], (4 * hidden_dim, input_dim), k_enc)
    enc_whh = u(ks[1], (4 * hidden_dim, hidden_dim), k_enc)
    enc_b = u(ks[2], (4 * hidden_dim,), k_enc) + u(ks[3], (4 * hidden_dim,), k_enc)
    dec_wih = u(ks[4], (4 * input_dim, hidden_dim), k_dec)
    dec_whh = u(ks[5], (4 * input_dim, input_dim), k_dec)
    dec_b = u(ks[6], (4 * input_dim,), k_dec) + u(ks[7], (4 * input_dim,), k_dec)
    return dict(
        enc_wih_T=enc_wih.T, enc_whh_T=enc_whh.T, enc_b=enc_b[None, :],
        dec_wih_T=dec_wih.T, dec_whh_T=dec_whh.T, dec_b=dec_b[None, :],
    )


# ------------------------------- pure-JAX reference ----------------------------------

def _lstm_ref(x_tbd, wih_T, whh_T, b, H):
    B = x_tbd.shape[1]

    def step(carry, x_t):
        h, c = carry
        gates = x_t @ wih_T + h @ whh_T + b
        i = jax.nn.sigmoid(gates[:, :H])
        f = jax.nn.sigmoid(gates[:, H:2 * H])
        g = jnp.tanh(gates[:, 2 * H:3 * H])
        o = jax.nn.sigmoid(gates[:, 3 * H:])
        c = f * c + i * g
        h = o * jnp.tanh(c)
        return (h, c), h

    (h, _), hs = jax.lax.scan(step, (jnp.zeros((B, H), jnp.float32),
                                     jnp.zeros((B, H), jnp.float32)), x_tbd)
    return h, hs


def lstmae_ref(x, params):
    H = params["enc_whh_T"].shape[0]
    Din = params["dec_whh_T"].shape[0]
    T = x.shape[1]
    h, _ = _lstm_ref(jnp.transpose(x, (1, 0, 2)),
                     params["enc_wih_T"], params["enc_whh_T"], params["enc_b"], H)
    dec_in = jnp.broadcast_to(h[None], (T,) + h.shape)  # repeat final h over time
    _, ys = _lstm_ref(dec_in, params["dec_wih_T"], params["dec_whh_T"],
                      params["dec_b"], Din)
    return jnp.transpose(ys, (1, 0, 2))


# ------------------------------------- main -------------------------------------------

if __name__ == "__main__":
    B, T, INPUT_DIM, HIDDEN_DIM = 2, 8, 16, 32

    key = jax.random.PRNGKey(0)
    k_x, k_p = jax.random.split(key)
    x = jax.random.normal(k_x, (B, T, INPUT_DIM), dtype=jnp.float32)
    params = init_params(k_p, INPUT_DIM, HIDDEN_DIM)

    reconstructed = jax.block_until_ready(lstmae_forward(x, params))
    assert reconstructed.shape == (B, T, INPUT_DIM), reconstructed.shape

    ref = jax.block_until_ready(lstmae_ref(x, params))
    if not jnp.allclose(reconstructed, ref, atol=1e-5, rtol=1e-5):
        raise AssertionError("Pallas LSTMAE output mismatch vs pure-JAX reference")

    print("KERNEL_OK")
</pallas_src>

<mosaic_0001>
module attributes {stable_mosaic.version = 11 : i64} {
  func.func @_lstmae_kernel(%arg0: i32, %arg1: memref<2x8x16xf32, #tpu.memory_space<vmem>>, %arg2: memref<16x128xf32, #tpu.memory_space<vmem>>, %arg3: memref<32x128xf32, #tpu.memory_space<vmem>>, %arg4: memref<1x128xf32, #tpu.memory_space<vmem>>, %arg5: memref<32x64xf32, #tpu.memory_space<vmem>>, %arg6: memref<16x64xf32, #tpu.memory_space<vmem>>, %arg7: memref<1x64xf32, #tpu.memory_space<vmem>>, %arg8: memref<2x8x16xf32, #tpu.memory_space<vmem>>, %arg9: memref<16x128xf32, #tpu.memory_space<vmem>>, %arg10: memref<16x16xf32, #tpu.memory_space<vmem>>) attributes {dimension_semantics = [#tpu.dimension_semantics<parallel>], iteration_bounds = array<i64: 1>, scalar_prefetch = 0 : i64, scratch_operands = 2 : i64, tpu.core_type = #tpu.core_type<tc>, window_params = [{transform_indices = @transform_0, window_bounds = array<i64: 2, 8, 16>}, {pipeline_mode = #tpu.pipeline_mode<synchronous>, transform_indices = @transform_1, window_bounds = array<i64: 16, 128>}, {pipeline_mode = #tpu.pipeline_mode<synchronous>, transform_indices = @transform_2, window_bounds = array<i64: 32, 128>}, {pipeline_mode = #tpu.pipeline_mode<synchronous>, transform_indices = @transform_3, window_bounds = array<i64: 1, 128>}, {pipeline_mode = #tpu.pipeline_mode<synchronous>, transform_indices = @transform_4, window_bounds = array<i64: 32, 64>}, {pipeline_mode = #tpu.pipeline_mode<synchronous>, transform_indices = @transform_5, window_bounds = array<i64: 16, 64>}, {pipeline_mode = #tpu.pipeline_mode<synchronous>, transform_indices = @transform_6, window_bounds = array<i64: 1, 64>}, {transform_indices = @transform_7, window_bounds = array<i64: 2, 8, 16>}]} {
    %c0 = arith.constant 0 : index
    %c0_0 = arith.constant 0 : index
    %c0_1 = arith.constant 0 : index
    %0 = vector.load %arg1[%c0, %c0_0, %c0_1] : memref<2x8x16xf32, #tpu.memory_space<vmem>>, vector<2x8x16xf32>
    %1 = vector.shape_cast %0 : vector<2x8x16xf32> to vector<16x16xf32>
    %c0_2 = arith.constant 0 : index
    %c0_3 = arith.constant 0 : index
    %2 = vector.load %arg2[%c0_2, %c0_3] : memref<16x128xf32, #tpu.memory_space<vmem>>, vector<16x128xf32>
    %cst = arith.constant dense<0.000000e+00> : vector<16x128xf32>
    %3 = tpu.matmul %1, %2, %cst {dimension_numbers = #tpu.dot_dimension_numbers<[1], [0], [0], [1], [0, 0, 1, 1], [], []>} : vector<16x16xf32>, vector<16x128xf32>, vector<16x128xf32> -> vector<16x128xf32>
    %c0_4 = arith.constant 0 : index
    %c0_5 = arith.constant 0 : index
    %4 = vector.load %arg4[%c0_4, %c0_5] : memref<1x128xf32, #tpu.memory_space<vmem>>, vector<1x128xf32>
    %5 = vector.broadcast %4 : vector<1x128xf32> to vector<16x128xf32>
    %6 = arith.addf %3, %5 : vector<16x128xf32>
    %c0_6 = arith.constant 0 : index
    %c0_7 = arith.constant 0 : index
    %7 = vector.load %arg9[%c0_6, %c0_7] : memref<16x128xf32, #tpu.memory_space<vmem>>, vector<16x128xf32>
    tpu.vector_store %arg9[%c0_6, %c0_7], %6 {strides = array<i32>} : memref<16x128xf32, #tpu.memory_space<vmem>>, vector<16x128xf32>,
    %c0_8 = arith.constant 0 : index
    %c0_9 = arith.constant 0 : index
    %8 = vector.load %arg3[%c0_8, %c0_9] : memref<32x128xf32, #tpu.memory_space<vmem>>, vector<32x128xf32>
    %cst_10 = arith.constant 0.000000e+00 : f32
    %9 = vector.broadcast %cst_10 : f32 to vector<2x32xf32>
    %cst_11 = arith.constant 0.000000e+00 : f32
    %10 = vector.broadcast %cst_11 : f32 to vector<2x32xf32>
    %c0_12 = arith.constant 0 : index
    %c0_13 = arith.constant 0 : index
    %11 = vector.load %arg9[%c0_12, %c0_13] : memref<16x128xf32, #tpu.memory_space<vmem>>, vector<1x128xf32>
    %c8 = arith.constant 8 : index
    %c0_14 = arith.constant 0 : index
    %12 = vector.load %arg9[%c8, %c0_14] : memref<16x128xf32, #tpu.memory_space<vmem>>, vector<1x128xf32>
    %13 = tpu.concatenate %11, %12 in 0 : vector<1x128xf32>, vector<1x128xf32> -> vector<2x128xf32>
    %cst_15 = arith.constant dense<0.000000e+00> : vector<2x128xf32>
    %14 = tpu.matmul %9, %8, %cst_15 {dimension_numbers = #tpu.dot_dimension_numbers<[1], [0], [0], [1], [0, 0, 1, 1], [], []>} : vector<2x32xf32>, vector<32x128xf32>, vector<2x128xf32> -> vector<2x128xf32>
    %15 = arith.addf %13, %14 : vector<2x128xf32>
    %16 = vector.extract_strided_slice %15 {offsets = [0, 0], sizes = [2, 32], strides = [1, 1]} : vector<2x128xf32> to vector<2x32xf32>
    %17 = arith.negf %16 : vector<2x32xf32>
    %18 = math.exp %17 : vector<2x32xf32>
    %cst_16 = arith.constant 1.000000e+00 : f32
    %19 = vector.broadcast %cst_16 : f32 to vector<2x32xf32>
    %20 = arith.addf %19, %18 : vector<2x32xf32>
    %21 = arith.divf %19, %20 : vector<2x32xf32>
    %22 = vector.extract_strided_slice %15 {offsets = [0, 32], sizes = [2, 32], strides = [1, 1]} : vector<2x128xf32> to vector<2x32xf32>
    %23 = arith.negf %22 : vector<2x32xf32>
    %24 = math.exp %23 : vector<2x32xf32>
    %cst_17 = arith.constant 1.000000e+00 : f32
    %25 = vector.broadcast %cst_17 : f32 to vector<2x32xf32>
    %26 = arith.addf %25, %24 : vector<2x32xf32>
    %27 = arith.divf %25, %26 : vector<2x32xf32>
    %28 = vector.extract_strided_slice %15 {offsets = [0, 64], sizes = [2, 32], strides = [1, 1]} : vector<2x128xf32> to vector<2x32xf32>
    %29 = math.tanh %28 : vector<2x32xf32>
    %30 = vector.extract_strided_slice %15 {offsets = [0, 96], sizes = [2, 32], strides = [1, 1]} : vector<2x128xf32> to vector<2x32xf32>
    %31 = arith.negf %30 : vector<2x32xf32>
    %32 = math.exp %31 : vector<2x32xf32>
    %cst_18 = arith.constant 1.000000e+00 : f32
    %33 = vector.broadcast %cst_18 : f32 to vector<2x32xf32>
    %34 = arith.addf %33, %32 : vector<2x32xf32>
    %35 = arith.divf %33, %34 : vector<2x32xf32>
    %36 = arith.mulf %27, %10 : vector<2x32xf32>
    %37 = arith.mulf %21, %29 : vector<2x32xf32>
    %38 = arith.addf %36, %37 : vector<2x32xf32>
    %39 = math.tanh %38 : vector<2x32xf32>
    %40 = arith.mulf %35, %39 : vector<2x32xf32>
    %c1 = arith.constant 1 : index
    %c0_19 = arith.constant 0 : index
    %41 = vector.load %arg9[%c1, %c0_19] : memref<16x128xf32, #tpu.memory_space<vmem>>, vector<1x128xf32>
    %c9 = arith.constant 9 : index
    %c0_20 = arith.constant 0 : index
    %42 = vector.load %arg9[%c9, %c0_20] : memref<16x128xf32, #tpu.memory_space<vmem>>, vector<1x128xf32>
    %43 = tpu.concatenate %41, %42 in 0 : vector<1x128xf32>, vector<1x128xf32> -> vector<2x128xf32>
    %cst_21 = arith.constant dense<0.000000e+00> : vector<2x128xf32>
    %44 = tpu.matmul %40, %8, %cst_21 {dimension_numbers = #tpu.dot_dimension_numbers<[1], [0], [0], [1], [0, 0, 1, 1], [], []>} : vector<2x32xf32>, vector<32x128xf32>, vector<2x128xf32> -> vector<2x128xf32>
    %45 = arith.addf %43, %44 : vector<2x128xf32>
    %46 = vector.extract_strided_slice %45 {offsets = [0, 0], sizes = [2, 32], strides = [1, 1]} : vector<2x128xf32> to vector<2x32xf32>
    %47 = arith.negf %46 : vector<2x32xf32>
    %48 = math.exp %47 : vector<2x32xf32>
    %cst_22 = arith.constant 1.000000e+00 : f32
    %49 = vector.broadcast %cst_22 : f32 to vector<2x32xf32>
    %50 = arith.addf %49, %48 : vector<2x32xf32>
    %51 = arith.divf %49, %50 : vector<2x32xf32>
    %52 = vector.extract_strided_slice %45 {offsets = [0, 32], sizes = [2, 32], strides = [1, 1]} : vector<2x128xf32> to vector<2x32xf32>
    %53 = arith.negf %52 : vector<2x32xf32>
    %54 = math.exp %53 : vector<2x32xf32>
    %cst_23 = arith.constant 1.000000e+00 : f32
    %55 = vector.broadcast %cst_23 : f32 to vector<2x32xf32>
    %56 = arith.addf %55, %54 : vector<2x32xf32>
    %57 = arith.divf %55, %56 : vector<2x32xf32>
    %58 = vector.extract_strided_slice %45 {offsets = [0, 64], sizes = [2, 32], strides = [1, 1]} : vector<2x128xf32> to vector<2x32xf32>
    %59 = math.tanh %58 : vector<2x32xf32>
    %60 = vector.extract_strided_slice %45 {offsets = [0, 96], sizes = [2, 32], strides = [1, 1]} : vector<2x128xf32> to vector<2x32xf32>
    %61 = arith.negf %60 : vector<2x32xf32>
    %62 = math.exp %61 : vector<2x32xf32>
    %cst_24 = arith.constant 1.000000e+00 : f32
    %63 = vector.broadcast %cst_24 : f32 to vector<2x32xf32>
    %64 = arith.addf %63, %62 : vector<2x32xf32>
    %65 = arith.divf %63, %64 : vector<2x32xf32>
    %66 = arith.mulf %57, %38 : vector<2x32xf32>
    %67 = arith.mulf %51, %59 : vector<2x32xf32>
    %68 = arith.addf %66, %67 : vector<2x32xf32>
    %69 = math.tanh %68 : vector<2x32xf32>
    %70 = arith.mulf %65, %69 : vector<2x32xf32>
    %c2 = arith.constant 2 : index
    %c0_25 = arith.constant 0 : index
    %71 = vector.load %arg9[%c2, %c0_25] : memref<16x128xf32, #tpu.memory_space<vmem>>, vector<1x128xf32>
    %c10 = arith.constant 10 : index
    %c0_26 = arith.constant 0 : index
    %72 = vector.load %arg9[%c10, %c0_26] : memref<16x128xf32, #tpu.memory_space<vmem>>, vector<1x128xf32>
    %73 = tpu.concatenate %71, %72 in 0 : vector<1x128xf32>, vector<1x128xf32> -> vector<2x128xf32>
    %cst_27 = arith.constant dense<0.000000e+00> : vector<2x128xf32>
    %74 = tpu.matmul %70, %8, %cst_27 {dimension_numbers = #tpu.dot_dimension_numbers<[1], [0], [0], [1], [0, 0, 1, 1], [], []>} : vector<2x32xf32>, vector<32x128xf32>, vector<2x128xf32> -> vector<2x128xf32>
    %75 = arith.addf %73, %74 : vector<2x128xf32>
    %76 = vector.extract_strided_slice %75 {offsets = [0, 0], sizes = [2, 32], strides = [1, 1]} : vector<2x128xf32> to vector<2x32xf32>
    %77 = arith.negf %76 : vector<2x32xf32>
    %78 = math.exp %77 : vector<2x32xf32>
    %cst_28 = arith.constant 1.000000e+00 : f32
    %79 = vector.broadcast %cst_28 : f32 to vector<2x32xf32>
    %80 = arith.addf %79, %78 : vector<2x32xf32>
    %81 = arith.divf %79, %80 : vector<2x32xf32>
    %82 = vector.extract_strided_slice %75 {offsets = [0, 32], sizes = [2, 32], strides = [1, 1]} : vector<2x128xf32> to vector<2x32xf32>
    %83 = arith.negf %82 : vector<2x32xf32>
    %84 = math.exp %83 : vector<2x32xf32>
    %cst_29 = arith.constant 1.000000e+00 : f32
    %85 = vector.broadcast %cst_29 : f32 to vector<2x32xf32>
    %86 = arith.addf %85, %84 : vector<2x32xf32>
    %87 = arith.divf %85, %86 : vector<2x32xf32>
    %88 = vector.extract_strided_slice %75 {offsets = [0, 64], sizes = [2, 32], strides = [1, 1]} : vector<2x128xf32> to vector<2x32xf32>
    %89 = math.tanh %88 : vector<2x32xf32>
    %90 = vector.extract_strided_slice %75 {offsets = [0, 96], sizes = [2, 32], strides = [1, 1]} : vector<2x128xf32> to vector<2x32xf32>
    %91 = arith.negf %90 : vector<2x32xf32>
    %92 = math.exp %91 : vector<2x32xf32>
    %cst_30 = arith.constant 1.000000e+00 : f32
    %93 = vector.broadcast %cst_30 : f32 to vector<2x32xf32>
    %94 = arith.addf %93, %92 : vector<2x32xf32>
    %95 = arith.divf %93, %94 : vector<2x32xf32>
    %96 = arith.mulf %87, %68 : vector<2x32xf32>
    %97 = arith.mulf %81, %89 : vector<2x32xf32>
    %98 = arith.addf %96, %97 : vector<2x32xf32>
    %99 = math.tanh %98 : vector<2x32xf32>
    %100 = arith.mulf %95, %99 : vector<2x32xf32>
    %c3 = arith.constant 3 : index
    %c0_31 = arith.constant 0 : index
    %101 = vector.load %arg9[%c3, %c0_31] : memref<16x128xf32, #tpu.memory_space<vmem>>, vector<1x128xf32>
    %c11 = arith.constant 11 : index
    %c0_32 = arith.constant 0 : index
    %102 = vector.load %arg9[%c11, %c0_32] : memref<16x128xf32, #tpu.memory_space<vmem>>, vector<1x128xf32>
    %103 = tpu.concatenate %101, %102 in 0 : vector<1x128xf32>, vector<1x128xf32> -> vector<2x128xf32>
    %cst_33 = arith.constant dense<0.000000e+00> : vector<2x128xf32>
    %104 = tpu.matmul %100, %8, %cst_33 {dimension_numbers = #tpu.dot_dimension_numbers<[1], [0], [0], [1], [0, 0, 1, 1], [], []>} : vector<2x32xf32>, vector<32x128xf32>, vector<2x128xf32> -> vector<2x128xf32>
    %105 = arith.addf %103, %104 : vector<2x128xf32>
    %106 = vector.extract_strided_slice %105 {offsets = [0, 0], sizes = [2, 32], strides = [1, 1]} : vector<2x128xf32> to vector<2x32xf32>
    %107 = arith.negf %106 : vector<2x32xf32>
    %108 = math.exp %107 : vector<2x32xf32>
    %cst_34 = arith.constant 1.000000e+00 : f32
    %109 = vector.broadcast %cst_34 : f32 to vector<2x32xf32>
    %110 = arith.addf %109, %108 : vector<2x32xf32>
    %111 = arith.divf %109, %110 : vector<2x32xf32>
    %112 = vector.extract_strided_slice %105 {offsets = [0, 32], sizes = [2, 32], strides = [1, 1]} : vector<2x128xf32> to vector<2x32xf32>
    %113 = arith.negf %112 : vector<2x32xf32>
    %114 = math.exp %113 : vector<2x32xf32>
    %cst_35 = arith.constant 1.000000e+00 : f32
    %115 = vector.broadcast %cst_35 : f32 to vector<2x32xf32>
    %116 = arith.addf %115, %114 : vector<2x32xf32>
    %117 = arith.divf %115, %116 : vector<2x32xf32>
    %118 = vector.extract_strided_slice %105 {offsets = [0, 64], sizes = [2, 32], strides = [1, 1]} : vector<2x128xf32> to vector<2x32xf32>
    %119 = math.tanh %118 : vector<2x32xf32>
    %120 = vector.extract_strided_slice %105 {offsets = [0, 96], sizes = [2, 32], strides = [1, 1]} : vector<2x128xf32> to vector<2x32xf32>
    %121 = arith.negf %120 : vector<2x32xf32>
    %122 = math.exp %121 : vector<2x32xf32>
    %cst_36 = arith.constant 1.000000e+00 : f32
    %123 = vector.broadcast %cst_36 : f32 to vector<2x32xf32>
    %124 = arith.addf %123, %122 : vector<2x32xf32>
    %125 = arith.divf %123, %124 : vector<2x32xf32>
    %126 = arith.mulf %117, %98 : vector<2x32xf32>
    %127 = arith.mulf %111, %119 : vector<2x32xf32>
    %128 = arith.addf %126, %127 : vector<2x32xf32>
    %129 = math.tanh %128 : vector<2x32xf32>
    %130 = arith.mulf %125, %129 : vector<2x32xf32>
    %c4 = arith.constant 4 : index
    %c0_37 = arith.constant 0 : index
    %131 = vector.load %arg9[%c4, %c0_37] : memref<16x128xf32, #tpu.memory_space<vmem>>, vector<1x128xf32>
    %c12 = arith.constant 12 : index
    %c0_38 = arith.constant 0 : index
    %132 = vector.load %arg9[%c12, %c0_38] : memref<16x128xf32, #tpu.memory_space<vmem>>, vector<1x128xf32>
    %133 = tpu.concatenate %131, %132 in 0 : vector<1x128xf32>, vector<1x128xf32> -> vector<2x128xf32>
    %cst_39 = arith.constant dense<0.000000e+00> : vector<2x128xf32>
    %134 = tpu.matmul %130, %8, %cst_39 {dimension_numbers = #tpu.dot_dimension_numbers<[1], [0], [0], [1], [0, 0, 1, 1], [], []>} : vector<2x32xf32>, vector<32x128xf32>, vector<2x128xf32> -> vector<2x128xf32>
    %135 = arith.addf %133, %134 : vector<2x128xf32>
    %136 = vector.extract_strided_slice %135 {offsets = [0, 0], sizes = [2, 32], strides = [1, 1]} : vector<2x128xf32> to vector<2x32xf32>
    %137 = arith.negf %136 : vector<2x32xf32>
    %138 = math.exp %137 : vector<2x32xf32>
    %cst_40 = arith.constant 1.000000e+00 : f32
    %139 = vector.broadcast %cst_40 : f32 to vector<2x32xf32>
    %140 = arith.addf %139, %138 : vector<2x32xf32>
    %141 = arith.divf %139, %140 : vector<2x32xf32>
    %142 = vector.extract_strided_slice %135 {offsets = [0, 32], sizes = [2, 32], strides = [1, 1]} : vector<2x128xf32> to vector<2x32xf32>
    %143 = arith.negf %142 : vector<2x32xf32>
    %144 = math.exp %143 : vector<2x32xf32>
    %cst_41 = arith.constant 1.000000e+00 : f32
    %145 = vector.broadcast %cst_41 : f32 to vector<2x32xf32>
    %146 = arith.addf %145, %144 : vector<2x32xf32>
    %147 = arith.divf %145, %146 : vector<2x32xf32>
    %148 = vector.extract_strided_slice %135 {offsets = [0, 64], sizes = [2, 32], strides = [1, 1]} : vector<2x128xf32> to vector<2x32xf32>
    %149 = math.tanh %148 : vector<2x32xf32>
    %150 = vector.extract_strided_slice %135 {offsets = [0, 96], sizes = [2, 32], strides = [1, 1]} : vector<2x128xf32> to vector<2x32xf32>
    %151 = arith.negf %150 : vector<2x32xf32>
    %152 = math.exp %151 : vector<2x32xf32>
    %cst_42 = arith.constant 1.000000e+00 : f32
    %153 = vector.broadcast %cst_42 : f32 to vector<2x32xf32>
    %154 = arith.addf %153, %152 : vector<2x32xf32>
    %155 = arith.divf %153, %154 : vector<2x32xf32>
    %156 = arith.mulf %147, %128 : vector<2x32xf32>
    %157 = arith.mulf %141, %149 : vector<2x32xf32>
    %158 = arith.addf %156, %157 : vector<2x32xf32>
    %159 = math.tanh %158 : vector<2x32xf32>
    %160 = arith.mulf %155, %159 : vector<2x32xf32>
    %c5 = arith.constant 5 : index
    %c0_43 = arith.constant 0 : index
    %161 = vector.load %arg9[%c5, %c0_43] : memref<16x128xf32, #tpu.memory_space<vmem>>, vector<1x128xf32>
    %c13 = arith.constant 13 : index
    %c0_44 = arith.constant 0 : index
    %162 = vector.load %arg9[%c13, %c0_44] : memref<16x128xf32, #tpu.memory_space<vmem>>, vector<1x128xf32>
    %163 = tpu.concatenate %161, %162 in 0 : vector<1x128xf32>, vector<1x128xf32> -> vector<2x128xf32>
    %cst_45 = arith.constant dense<0.000000e+00> : vector<2x128xf32>
    %164 = tpu.matmul %160, %8, %cst_45 {dimension_numbers = #tpu.dot_dimension_numbers<[1], [0], [0], [1], [0, 0, 1, 1], [], []>} : vector<2x32xf32>, vector<32x128xf32>, vector<2x128xf32> -> vector<2x128xf32>
    %165 = arith.addf %163, %164 : vector<2x128xf32>
    %166 = vector.extract_strided_slice %165 {offsets = [0, 0], sizes = [2, 32], strides = [1, 1]} : vector<2x128xf32> to vector<2x32xf32>
    %167 = arith.negf %166 : vector<2x32xf32>
    %168 = math.exp %167 : vector<2x32xf32>
    %cst_46 = arith.constant 1.000000e+00 : f32
    %169 = vector.broadcast %cst_46 : f32 to vector<2x32xf32>
    %170 = arith.addf %169, %168 : vector<2x32xf32>
    %171 = arith.divf %169, %170 : vector<2x32xf32>
    %172 = vector.extract_strided_slice %165 {offsets = [0, 32], sizes = [2, 32], strides = [1, 1]} : vector<2x128xf32> to vector<2x32xf32>
    %173 = arith.negf %172 : vector<2x32xf32>
    %174 = math.exp %173 : vector<2x32xf32>
    %cst_47 = arith.constant 1.000000e+00 : f32
    %175 = vector.broadcast %cst_47 : f32 to vector<2x32xf32>
    %176 = arith.addf %175, %174 : vector<2x32xf32>
    %177 = arith.divf %175, %176 : vector<2x32xf32>
    %178 = vector.extract_strided_slice %165 {offsets = [0, 64], sizes = [2, 32], strides = [1, 1]} : vector<2x128xf32> to vector<2x32xf32>
    %179 = math.tanh %178 : vector<2x32xf32>
    %180 = vector.extract_strided_slice %165 {offsets = [0, 96], sizes = [2, 32], strides = [1, 1]} : vector<2x128xf32> to vector<2x32xf32>
    %181 = arith.negf %180 : vector<2x32xf32>
    %182 = math.exp %181 : vector<2x32xf32>
    %cst_48 = arith.constant 1.000000e+00 : f32
    %183 = vector.broadcast %cst_48 : f32 to vector<2x32xf32>
    %184 = arith.addf %183, %182 : vector<2x32xf32>
    %185 = arith.divf %183, %184 : vector<2x32xf32>
    %186 = arith.mulf %177, %158 : vector<2x32xf32>
    %187 = arith.mulf %171, %179 : vector<2x32xf32>
    %188 = arith.addf %186, %187 : vector<2x32xf32>
    %189 = math.tanh %188 : vector<2x32xf32>
    %190 = arith.mulf %185, %189 : vector<2x32xf32>
    %c6 = arith.constant 6 : index
    %c0_49 = arith.constant 0 : index
    %191 = vector.load %arg9[%c6, %c0_49] : memref<16x128xf32, #tpu.memory_space<vmem>>, vector<1x128xf32>
    %c14 = arith.constant 14 : index
    %c0_50 = arith.constant 0 : index
    %192 = vector.load %arg9[%c14, %c0_50] : memref<16x128xf32, #tpu.memory_space<vmem>>, vector<1x128xf32>
    %193 = tpu.concatenate %191, %192 in 0 : vector<1x128xf32>, vector<1x128xf32> -> vector<2x128xf32>
    %cst_51 = arith.constant dense<0.000000e+00> : vector<2x128xf32>
    %194 = tpu.matmul %190, %8, %cst_51 {dimension_numbers = #tpu.dot_dimension_numbers<[1], [0], [0], [1], [0, 0, 1, 1], [], []>} : vector<2x32xf32>, vector<32x128xf32>, vector<2x128xf32> -> vector<2x128xf32>
    %195 = arith.addf %193, %194 : vector<2x128xf32>
    %196 = vector.extract_strided_slice %195 {offsets = [0, 0], sizes = [2, 32], strides = [1, 1]} : vector<2x128xf32> to vector<2x32xf32>
    %197 = arith.negf %196 : vector<2x32xf32>
    %198 = math.exp %197 : vector<2x32xf32>
    %cst_52 = arith.constant 1.000000e+00 : f32
    %199 = vector.broadcast %cst_52 : f32 to vector<2x32xf32>
    %200 = arith.addf %199, %198 : vector<2x32xf32>
    %201 = arith.divf %199, %200 : vector<2x32xf32>
    %202 = vector.extract_strided_slice %195 {offsets = [0, 32], sizes = [2, 32], strides = [1, 1]} : vector<2x128xf32> to vector<2x32xf32>
    %203 = arith.negf %202 : vector<2x32xf32>
    %204 = math.exp %203 : vector<2x32xf32>
    %cst_53 = arith.constant 1.000000e+00 : f32
    %205 = vector.broadcast %cst_53 : f32 to vector<2x32xf32>
    %206 = arith.addf %205, %204 : vector<2x32xf32>
    %207 = arith.divf %205, %206 : vector<2x32xf32>
    %208 = vector.extract_strided_slice %195 {offsets = [0, 64], sizes = [2, 32], strides = [1, 1]} : vector<2x128xf32> to vector<2x32xf32>
    %209 = math.tanh %208 : vector<2x32xf32>
    %210 = vector.extract_strided_slice %195 {offsets = [0, 96], sizes = [2, 32], strides = [1, 1]} : vector<2x128xf32> to vector<2x32xf32>
    %211 = arith.negf %210 : vector<2x32xf32>
    %212 = math.exp %211 : vector<2x32xf32>
    %cst_54 = arith.constant 1.000000e+00 : f32
    %213 = vector.broadcast %cst_54 : f32 to vector<2x32xf32>
    %214 = arith.addf %213, %212 : vector<2x32xf32>
    %215 = arith.divf %213, %214 : vector<2x32xf32>
    %216 = arith.mulf %207, %188 : vector<2x32xf32>
    %217 = arith.mulf %201, %209 : vector<2x32xf32>
    %218 = arith.addf %216, %217 : vector<2x32xf32>
    %219 = math.tanh %218 : vector<2x32xf32>
    %220 = arith.mulf %215, %219 : vector<2x32xf32>
    %c7 = arith.constant 7 : index
    %c0_55 = arith.constant 0 : index
    %221 = vector.load %arg9[%c7, %c0_55] : memref<16x128xf32, #tpu.memory_space<vmem>>, vector<1x128xf32>
    %c15 = arith.constant 15 : index
    %c0_56 = arith.constant 0 : index
    %222 = vector.load %arg9[%c15, %c0_56] : memref<16x128xf32, #tpu.memory_space<vmem>>, vector<1x128xf32>
    %223 = tpu.concatenate %221, %222 in 0 : vector<1x128xf32>, vector<1x128xf32> -> vector<2x128xf32>
    %cst_57 = arith.constant dense<0.000000e+00> : vector<2x128xf32>
    %224 = tpu.matmul %220, %8, %cst_57 {dimension_numbers = #tpu.dot_dimension_numbers<[1], [0], [0], [1], [0, 0, 1, 1], [], []>} : vector<2x32xf32>, vector<32x128xf32>, vector<2x128xf32> -> vector<2x128xf32>
    %225 = arith.addf %223, %224 : vector<2x128xf32>
    %226 = vector.extract_strided_slice %225 {offsets = [0, 0], sizes = [2, 32], strides = [1, 1]} : vector<2x128xf32> to vector<2x32xf32>
    %227 = arith.negf %226 : vector<2x32xf32>
    %228 = math.exp %227 : vector<2x32xf32>
    %cst_58 = arith.constant 1.000000e+00 : f32
    %229 = vector.broadcast %cst_58 : f32 to vector<2x32xf32>
    %230 = arith.addf %229, %228 : vector<2x32xf32>
    %231 = arith.divf %229, %230 : vector<2x32xf32>
    %232 = vector.extract_strided_slice %225 {offsets = [0, 32], sizes = [2, 32], strides = [1, 1]} : vector<2x128xf32> to vector<2x32xf32>
    %233 = arith.negf %232 : vector<2x32xf32>
    %234 = math.exp %233 : vector<2x32xf32>
    %cst_59 = arith.constant 1.000000e+00 : f32
    %235 = vector.broadcast %cst_59 : f32 to vector<2x32xf32>
    %236 = arith.addf %235, %234 : vector<2x32xf32>
    %237 = arith.divf %235, %236 : vector<2x32xf32>
    %238 = vector.extract_strided_slice %225 {offsets = [0, 64], sizes = [2, 32], strides = [1, 1]} : vector<2x128xf32> to vector<2x32xf32>
    %239 = math.tanh %238 : vector<2x32xf32>
    %240 = vector.extract_strided_slice %225 {offsets = [0, 96], sizes = [2, 32], strides = [1, 1]} : vector<2x128xf32> to vector<2x32xf32>
    %241 = arith.negf %240 : vector<2x32xf32>
    %242 = math.exp %241 : vector<2x32xf32>
    %cst_60 = arith.constant 1.000000e+00 : f32
    %243 = vector.broadcast %cst_60 : f32 to vector<2x32xf32>
    %244 = arith.addf %243, %242 : vector<2x32xf32>
    %245 = arith.divf %243, %244 : vector<2x32xf32>
    %246 = arith.mulf %237, %218 : vector<2x32xf32>
    %247 = arith.mulf %231, %239 : vector<2x32xf32>
    %248 = arith.addf %246, %247 : vector<2x32xf32>
    %249 = math.tanh %248 : vector<2x32xf32>
    %250 = arith.mulf %245, %249 : vector<2x32xf32>
    %c0_61 = arith.constant 0 : index
    %c0_62 = arith.constant 0 : index
    %251 = vector.load %arg5[%c0_61, %c0_62] : memref<32x64xf32, #tpu.memory_space<vmem>>, vector<32x64xf32>
    %cst_63 = arith.constant dense<0.000000e+00> : vector<2x64xf32>
    %252 = tpu.matmul %250, %251, %cst_63 {dimension_numbers = #tpu.dot_dimension_numbers<[1], [0], [0], [1], [0, 0, 1, 1], [], []>} : vector<2x32xf32>, vector<32x64xf32>, vector<2x64xf32> -> vector<2x64xf32>
    %c0_64 = arith.constant 0 : index
    %c0_65 = arith.constant 0 : index
    %253 = vector.load %arg7[%c0_64, %c0_65] : memref<1x64xf32, #tpu.memory_space<vmem>>, vector<1x64xf32>
    %254 = vector.broadcast %253 : vector<1x64xf32> to vector<2x64xf32>
    %255 = arith.addf %252, %254 : vector<2x64xf32>
    %c0_66 = arith.constant 0 : index
    %c0_67 = arith.constant 0 : index
    %256 = vector.load %arg6[%c0_66, %c0_67] : memref<16x64xf32, #tpu.memory_space<vmem>>, vector<16x64xf32>
    %cst_68 = arith.constant 0.000000e+00 : f32
    %257 = vector.broadcast %cst_68 : f32 to vector<2x16xf32>
    %cst_69 = arith.constant 0.000000e+00 : f32
    %258 = vector.broadcast %cst_69 : f32 to vector<2x16xf32>
    %cst_70 = arith.constant dense<0.000000e+00> : vector<2x64xf32>
    %259 = tpu.matmul %257, %256, %cst_70 {dimension_numbers = #tpu.dot_dimension_numbers<[1], [0], [0], [1], [0, 0, 1, 1], [], []>} : vector<2x16xf32>, vector<16x64xf32>, vector<2x64xf32> -> vector<2x64xf32>
    %260 = arith.addf %255, %259 : vector<2x64xf32>
    %261 = vector.extract_strided_slice %260 {offsets = [0, 0], sizes = [2, 16], strides = [1, 1]} : vector<2x64xf32> to vector<2x16xf32>
    %262 = arith.negf %261 : vector<2x16xf32>
    %263 = math.exp %262 : vector<2x16xf32>
    %cst_71 = arith.constant 1.000000e+00 : f32
    %264 = vector.broadcast %cst_71 : f32 to vector<2x16xf32>
    %265 = arith.addf %264, %263 : vector<2x16xf32>
    %266 = arith.divf %264, %265 : vector<2x16xf32>
    %267 = vector.extract_strided_slice %260 {offsets = [0, 16], sizes = [2, 16], strides = [1, 1]} : vector<2x64xf32> to vector<2x16xf32>
    %268 = arith.negf %267 : vector<2x16xf32>
    %269 = math.exp %268 : vector<2x16xf32>
    %cst_72 = arith.constant 1.000000e+00 : f32
    %270 = vector.broadcast %cst_72 : f32 to vector<2x16xf32>
    %271 = arith.addf %270, %269 : vector<2x16xf32>
    %272 = arith.divf %270, %271 : vector<2x16xf32>
    %273 = vector.extract_strided_slice %260 {offsets = [0, 32], sizes = [2, 16], strides = [1, 1]} : vector<2x64xf32> to vector<2x16xf32>
    %274 = math.tanh %273 : vector<2x16xf32>
    %275 = vector.extract_strided_slice %260 {offsets = [0, 48], sizes = [2, 16], strides = [1, 1]} : vector<2x64xf32> to vector<2x16xf32>
    %276 = arith.negf %275 : vector<2x16xf32>
    %277 = math.exp %276 : vector<2x16xf32>
    %cst_73 = arith.constant 1.000000e+00 : f32
    %278 = vector.broadcast %cst_73 : f32 to vector<2x16xf32>
    %279 = arith.addf %278, %277 : vector<2x16xf32>
    %280 = arith.divf %278, %279 : vector<2x16xf32>
    %281 = arith.mulf %272, %258 : vector<2x16xf32>
    %282 = arith.mulf %266, %274 : vector<2x16xf32>
    %283 = arith.addf %281, %282 : vector<2x16xf32>
    %284 = math.tanh %283 : vector<2x16xf32>
    %285 = arith.mulf %280, %284 : vector<2x16xf32>
    %286 = vector.extract_strided_slice %285 {offsets = [0, 0], sizes = [1, 16], strides = [1, 1]} : vector<2x16xf32> to vector<1x16xf32>
    %c0_74 = arith.constant 0 : index
    %c0_75 = arith.constant 0 : index
    %287 = vector.load %arg10[%c0_74, %c0_75] : memref<16x16xf32, #tpu.memory_space<vmem>>, vector<1x16xf32>
    tpu.vector_store %arg10[%c0_74, %c0_75], %286 {strides = array<i32>} : memref<16x16xf32, #tpu.memory_space<vmem>>, vector<1x16xf32>,
    %288 = vector.extract_strided_slice %285 {offsets = [1, 0], sizes = [1, 16], strides = [1, 1]} : vector<2x16xf32> to vector<1x16xf32>
    %c8_76 = arith.constant 8 : index
    %c0_77 = arith.constant 0 : index
    %289 = vector.load %arg10[%c8_76, %c0_77] : memref<16x16xf32, #tpu.memory_space<vmem>>, vector<1x16xf32>
    tpu.vector_store %arg10[%c8_76, %c0_77], %288 {strides = array<i32>} : memref<16x16xf32, #tpu.memory_space<vmem>>, vector<1x16xf32>,
    %cst_78 = arith.constant dense<0.000000e+00> : vector<2x64xf32>
    %290 = tpu.matmul %285, %256, %cst_78 {dimension_numbers = #tpu.dot_dimension_numbers<[1], [0], [0], [1], [0, 0, 1, 1], [], []>} : vector<2x16xf32>, vector<16x64xf32>, vector<2x64xf32> -> vector<2x64xf32>
    %291 = arith.addf %255, %290 : vector<2x64xf32>
    %292 = vector.extract_strided_slice %291 {offsets = [0, 0], sizes = [2, 16], strides = [1, 1]} : vector<2x64xf32> to vector<2x16xf32>
    %293 = arith.negf %292 : vector<2x16xf32>
    %294 = math.exp %293 : vector<2x16xf32>
    %cst_79 = arith.constant 1.000000e+00 : f32
    %295 = vector.broadcast %cst_79 : f32 to vector<2x16xf32>
    %296 = arith.addf %295, %294 : vector<2x16xf32>
    %297 = arith.divf %295, %296 : vector<2x16xf32>
    %298 = vector.extract_strided_slice %291 {offsets = [0, 16], sizes = [2, 16], strides = [1, 1]} : vector<2x64xf32> to vector<2x16xf32>
    %299 = arith.negf %298 : vector<2x16xf32>
    %300 = math.exp %299 : vector<2x16xf32>
    %cst_80 = arith.constant 1.000000e+00 : f32
    %301 = vector.broadcast %cst_80 : f32 to vector<2x16xf32>
    %302 = arith.addf %301, %300 : vector<2x16xf32>
    %303 = arith.divf %301, %302 : vector<2x16xf32>
    %304 = vector.extract_strided_slice %291 {offsets = [0, 32], sizes = [2, 16], strides = [1, 1]} : vector<2x64xf32> to vector<2x16xf32>
    %305 = math.tanh %304 : vector<2x16xf32>
    %306 = vector.extract_strided_slice %291 {offsets = [0, 48], sizes = [2, 16], strides = [1, 1]} : vector<2x64xf32> to vector<2x16xf32>
    %307 = arith.negf %306 : vector<2x16xf32>
    %308 = math.exp %307 : vector<2x16xf32>
    %cst_81 = arith.constant 1.000000e+00 : f32
    %309 = vector.broadcast %cst_81 : f32 to vector<2x16xf32>
    %310 = arith.addf %309, %308 : vector<2x16xf32>
    %311 = arith.divf %309, %310 : vector<2x16xf32>
    %312 = arith.mulf %303, %283 : vector<2x16xf32>
    %313 = arith.mulf %297, %305 : vector<2x16xf32>
    %314 = arith.addf %312, %313 : vector<2x16xf32>
    %315 = math.tanh %314 : vector<2x16xf32>
    %316 = arith.mulf %311, %315 : vector<2x16xf32>
    %317 = vector.extract_strided_slice %316 {offsets = [0, 0], sizes = [1, 16], strides = [1, 1]} : vector<2x16xf32> to vector<1x16xf32>
    %c1_82 = arith.constant 1 : index
    %c0_83 = arith.constant 0 : index
    %318 = vector.load %arg10[%c1_82, %c0_83] : memref<16x16xf32, #tpu.memory_space<vmem>>, vector<1x16xf32>
    tpu.vector_store %arg10[%c1_82, %c0_83], %317 {strides = array<i32>} : memref<16x16xf32, #tpu.memory_space<vmem>>, vector<1x16xf32>,
    %319 = vector.extract_strided_slice %316 {offsets = [1, 0], sizes = [1, 16], strides = [1, 1]} : vector<2x16xf32> to vector<1x16xf32>
    %c9_84 = arith.constant 9 : index
    %c0_85 = arith.constant 0 : index
    %320 = vector.load %arg10[%c9_84, %c0_85] : memref<16x16xf32, #tpu.memory_space<vmem>>, vector<1x16xf32>
    tpu.vector_store %arg10[%c9_84, %c0_85], %319 {strides = array<i32>} : memref<16x16xf32, #tpu.memory_space<vmem>>, vector<1x16xf32>,
    %cst_86 = arith.constant dense<0.000000e+00> : vector<2x64xf32>
    %321 = tpu.matmul %316, %256, %cst_86 {dimension_numbers = #tpu.dot_dimension_numbers<[1], [0], [0], [1], [0, 0, 1, 1], [], []>} : vector<2x16xf32>, vector<16x64xf32>, vector<2x64xf32> -> vector<2x64xf32>
    %322 = arith.addf %255, %321 : vector<2x64xf32>
    %323 = vector.extract_strided_slice %322 {offsets = [0, 0], sizes = [2, 16], strides = [1, 1]} : vector<2x64xf32> to vector<2x16xf32>
    %324 = arith.negf %323 : vector<2x16xf32>
    %325 = math.exp %324 : vector<2x16xf32>
    %cst_87 = arith.constant 1.000000e+00 : f32
    %326 = vector.broadcast %cst_87 : f32 to vector<2x16xf32>
    %327 = arith.addf %326, %325 : vector<2x16xf32>
    %328 = arith.divf %326, %327 : vector<2x16xf32>
    %329 = vector.extract_strided_slice %322 {offsets = [0, 16], sizes = [2, 16], strides = [1, 1]} : vector<2x64xf32> to vector<2x16xf32>
    %330 = arith.negf %329 : vector<2x16xf32>
    %331 = math.exp %330 : vector<2x16xf32>
    %cst_88 = arith.constant 1.000000e+00 : f32
    %332 = vector.broadcast %cst_88 : f32 to vector<2x16xf32>
    %333 = arith.addf %332, %331 : vector<2x16xf32>
    %334 = arith.divf %332, %333 : vector<2x16xf32>
    %335 = vector.extract_strided_slice %322 {offsets = [0, 32], sizes = [2, 16], strides = [1, 1]} : vector<2x64xf32> to vector<2x16xf32>
    %336 = math.tanh %335 : vector<2x16xf32>
    %337 = vector.extract_strided_slice %322 {offsets = [0, 48], sizes = [2, 16], strides = [1, 1]} : vector<2x64xf32> to vector<2x16xf32>
    %338 = arith.negf %337 : vector<2x16xf32>
    %339 = math.exp %338 : vector<2x16xf32>
    %cst_89 = arith.constant 1.000000e+00 : f32
    %340 = vector.broadcast %cst_89 : f32 to vector<2x16xf32>
    %341 = arith.addf %340, %339 : vector<2x16xf32>
    %342 = arith.divf %340, %341 : vector<2x16xf32>
    %343 = arith.mulf %334, %314 : vector<2x16xf32>
    %344 = arith.mulf %328, %336 : vector<2x16xf32>
    %345 = arith.addf %343, %344 : vector<2x16xf32>
    %346 = math.tanh %345 : vector<2x16xf32>
    %347 = arith.mulf %342, %346 : vector<2x16xf32>
    %348 = vector.extract_strided_slice %347 {offsets = [0, 0], sizes = [1, 16], strides = [1, 1]} : vector<2x16xf32> to vector<1x16xf32>
    %c2_90 = arith.constant 2 : index
    %c0_91 = arith.constant 0 : index
    %349 = vector.load %arg10[%c2_90, %c0_91] : memref<16x16xf32, #tpu.memory_space<vmem>>, vector<1x16xf32>
    tpu.vector_store %arg10[%c2_90, %c0_91], %348 {strides = array<i32>} : memref<16x16xf32, #tpu.memory_space<vmem>>, vector<1x16xf32>,
    %350 = vector.extract_strided_slice %347 {offsets = [1, 0], sizes = [1, 16], strides = [1, 1]} : vector<2x16xf32> to vector<1x16xf32>
    %c10_92 = arith.constant 10 : index
    %c0_93 = arith.constant 0 : index
    %351 = vector.load %arg10[%c10_92, %c0_93] : memref<16x16xf32, #tpu.memory_space<vmem>>, vector<1x16xf32>
    tpu.vector_store %arg10[%c10_92, %c0_93], %350 {strides = array<i32>} : memref<16x16xf32, #tpu.memory_space<vmem>>, vector<1x16xf32>,
    %cst_94 = arith.constant dense<0.000000e+00> : vector<2x64xf32>
    %352 = tpu.matmul %347, %256, %cst_94 {dimension_numbers = #tpu.dot_dimension_numbers<[1], [0], [0], [1], [0, 0, 1, 1], [], []>} : vector<2x16xf32>, vector<16x64xf32>, vector<2x64xf32> -> vector<2x64xf32>
    %353 = arith.addf %255, %352 : vector<2x64xf32>
    %354 = vector.extract_strided_slice %353 {offsets = [0, 0], sizes = [2, 16], strides = [1, 1]} : vector<2x64xf32> to vector<2x16xf32>
    %355 = arith.negf %354 : vector<2x16xf32>
    %356 = math.exp %355 : vector<2x16xf32>
    %cst_95 = arith.constant 1.000000e+00 : f32
    %357 = vector.broadcast %cst_95 : f32 to vector<2x16xf32>
    %358 = arith.addf %357, %356 : vector<2x16xf32>
    %359 = arith.divf %357, %358 : vector<2x16xf32>
    %360 = vector.extract_strided_slice %353 {offsets = [0, 16], sizes = [2, 16], strides = [1, 1]} : vector<2x64xf32> to vector<2x16xf32>
    %361 = arith.negf %360 : vector<2x16xf32>
    %362 = math.exp %361 : vector<2x16xf32>
    %cst_96 = arith.constant 1.000000e+00 : f32
    %363 = vector.broadcast %cst_96 : f32 to vector<2x16xf32>
    %364 = arith.addf %363, %362 : vector<2x16xf32>
    %365 = arith.divf %363, %364 : vector<2x16xf32>
    %366 = vector.extract_strided_slice %353 {offsets = [0, 32], sizes = [2, 16], strides = [1, 1]} : vector<2x64xf32> to vector<2x16xf32>
    %367 = math.tanh %366 : vector<2x16xf32>
    %368 = vector.extract_strided_slice %353 {offsets = [0, 48], sizes = [2, 16], strides = [1, 1]} : vector<2x64xf32> to vector<2x16xf32>
    %369 = arith.negf %368 : vector<2x16xf32>
    %370 = math.exp %369 : vector<2x16xf32>
    %cst_97 = arith.constant 1.000000e+00 : f32
    %371 = vector.broadcast %cst_97 : f32 to vector<2x16xf32>
    %372 = arith.addf %371, %370 : vector<2x16xf32>
    %373 = arith.divf %371, %372 : vector<2x16xf32>
    %374 = arith.mulf %365, %345 : vector<2x16xf32>
    %375 = arith.mulf %359, %367 : vector<2x16xf32>
    %376 = arith.addf %374, %375 : vector<2x16xf32>
    %377 = math.tanh %376 : vector<2x16xf32>
    %378 = arith.mulf %373, %377 : vector<2x16xf32>
    %379 = vector.extract_strided_slice %378 {offsets = [0, 0], sizes = [1, 16], strides = [1, 1]} : vector<2x16xf32> to vector<1x16xf32>
    %c3_98 = arith.constant 3 : index
    %c0_99 = arith.constant 0 : index
    %380 = vector.load %arg10[%c3_98, %c0_99] : memref<16x16xf32, #tpu.memory_space<vmem>>, vector<1x16xf32>
    tpu.vector_store %arg10[%c3_98, %c0_99], %379 {strides = array<i32>} : memref<16x16xf32, #tpu.memory_space<vmem>>, vector<1x16xf32>,
    %381 = vector.extract_strided_slice %378 {offsets = [1, 0], sizes = [1, 16], strides = [1, 1]} : vector<2x16xf32> to vector<1x16xf32>
    %c11_100 = arith.constant 11 : index
    %c0_101 = arith.constant 0 : index
    %382 = vector.load %arg10[%c11_100, %c0_101] : memref<16x16xf32, #tpu.memory_space<vmem>>, vector<1x16xf32>
    tpu.vector_store %arg10[%c11_100, %c0_101], %381 {strides = array<i32>} : memref<16x16xf32, #tpu.memory_space<vmem>>, vector<1x16xf32>,
    %cst_102 = arith.constant dense<0.000000e+00> : vector<2x64xf32>
    %383 = tpu.matmul %378, %256, %cst_102 {dimension_numbers = #tpu.dot_dimension_numbers<[1], [0], [0], [1], [0, 0, 1, 1], [], []>} : vector<2x16xf32>, vector<16x64xf32>, vector<2x64xf32> -> vector<2x64xf32>
    %384 = arith.addf %255, %383 : vector<2x64xf32>
    %385 = vector.extract_strided_slice %384 {offsets = [0, 0], sizes = [2, 16], strides = [1, 1]} : vector<2x64xf32> to vector<2x16xf32>
    %386 = arith.negf %385 : vector<2x16xf32>
    %387 = math.exp %386 : vector<2x16xf32>
    %cst_103 = arith.constant 1.000000e+00 : f32
    %388 = vector.broadcast %cst_103 : f32 to vector<2x16xf32>
    %389 = arith.addf %388, %387 : vector<2x16xf32>
    %390 = arith.divf %388, %389 : vector<2x16xf32>
    %391 = vector.extract_strided_slice %384 {offsets = [0, 16], sizes = [2, 16], strides = [1, 1]} : vector<2x64xf32> to vector<2x16xf32>
    %392 = arith.negf %391 : vector<2x16xf32>
    %393 = math.exp %392 : vector<2x16xf32>
    %cst_104 = arith.constant 1.000000e+00 : f32
    %394 = vector.broadcast %cst_104 : f32 to vector<2x16xf32>
    %395 = arith.addf %394, %393 : vector<2x16xf32>
    %396 = arith.divf %394, %395 : vector<2x16xf32>
    %397 = vector.extract_strided_slice %384 {offsets = [0, 32], sizes = [2, 16], strides = [1, 1]} : vector<2x64xf32> to vector<2x16xf32>
    %398 = math.tanh %397 : vector<2x16xf32>
    %399 = vector.extract_strided_slice %384 {offsets = [0, 48], sizes = [2, 16], strides = [1, 1]} : vector<2x64xf32> to vector<2x16xf32>
    %400 = arith.negf %399 : vector<2x16xf32>
    %401 = math.exp %400 : vector<2x16xf32>
    %cst_105 = arith.constant 1.000000e+00 : f32
    %402 = vector.broadcast %cst_105 : f32 to vector<2x16xf32>
    %403 = arith.addf %402, %401 : vector<2x16xf32>
    %404 = arith.divf %402, %403 : vector<2x16xf32>
    %405 = arith.mulf %396, %376 : vector<2x16xf32>
    %406 = arith.mulf %390, %398 : vector<2x16xf32>
    %407 = arith.addf %405, %406 : vector<2x16xf32>
    %408 = math.tanh %407 : vector<2x16xf32>
    %409 = arith.mulf %404, %408 : vector<2x16xf32>
    %410 = vector.extract_strided_slice %409 {offsets = [0, 0], sizes = [1, 16], strides = [1, 1]} : vector<2x16xf32> to vector<1x16xf32>
    %c4_106 = arith.constant 4 : index
    %c0_107 = arith.constant 0 : index
    %411 = vector.load %arg10[%c4_106, %c0_107] : memref<16x16xf32, #tpu.memory_space<vmem>>, vector<1x16xf32>
    tpu.vector_store %arg10[%c4_106, %c0_107], %410 {strides = array<i32>} : memref<16x16xf32, #tpu.memory_space<vmem>>, vector<1x16xf32>,
    %412 = vector.extract_strided_slice %409 {offsets = [1, 0], sizes = [1, 16], strides = [1, 1]} : vector<2x16xf32> to vector<1x16xf32>
    %c12_108 = arith.constant 12 : index
    %c0_109 = arith.constant 0 : index
    %413 = vector.load %arg10[%c12_108, %c0_109] : memref<16x16xf32, #tpu.memory_space<vmem>>, vector<1x16xf32>
    tpu.vector_store %arg10[%c12_108, %c0_109], %412 {strides = array<i32>} : memref<16x16xf32, #tpu.memory_space<vmem>>, vector<1x16xf32>,
    %cst_110 = arith.constant dense<0.000000e+00> : vector<2x64xf32>
    %414 = tpu.matmul %409, %256, %cst_110 {dimension_numbers = #tpu.dot_dimension_numbers<[1], [0], [0], [1], [0, 0, 1, 1], [], []>} : vector<2x16xf32>, vector<16x64xf32>, vector<2x64xf32> -> vector<2x64xf32>
    %415 = arith.addf %255, %414 : vector<2x64xf32>
    %416 = vector.extract_strided_slice %415 {offsets = [0, 0], sizes = [2, 16], strides = [1, 1]} : vector<2x64xf32> to vector<2x16xf32>
    %417 = arith.negf %416 : vector<2x16xf32>
    %418 = math.exp %417 : vector<2x16xf32>
    %cst_111 = arith.constant 1.000000e+00 : f32
    %419 = vector.broadcast %cst_111 : f32 to vector<2x16xf32>
    %420 = arith.addf %419, %418 : vector<2x16xf32>
    %421 = arith.divf %419, %420 : vector<2x16xf32>
    %422 = vector.extract_strided_slice %415 {offsets = [0, 16], sizes = [2, 16], strides = [1, 1]} : vector<2x64xf32> to vector<2x16xf32>
    %423 = arith.negf %422 : vector<2x16xf32>
    %424 = math.exp %423 : vector<2x16xf32>
    %cst_112 = arith.constant 1.000000e+00 : f32
    %425 = vector.broadcast %cst_112 : f32 to vector<2x16xf32>
    %426 = arith.addf %425, %424 : vector<2x16xf32>
    %427 = arith.divf %425, %426 : vector<2x16xf32>
    %428 = vector.extract_strided_slice %415 {offsets = [0, 32], sizes = [2, 16], strides = [1, 1]} : vector<2x64xf32> to vector<2x16xf32>
    %429 = math.tanh %428 : vector<2x16xf32>
    %430 = vector.extract_strided_slice %415 {offsets = [0, 48], sizes = [2, 16], strides = [1, 1]} : vector<2x64xf32> to vector<2x16xf32>
    %431 = arith.negf %430 : vector<2x16xf32>
    %432 = math.exp %431 : vector<2x16xf32>
    %cst_113 = arith.constant 1.000000e+00 : f32
    %433 = vector.broadcast %cst_113 : f32 to vector<2x16xf32>
    %434 = arith.addf %433, %432 : vector<2x16xf32>
    %435 = arith.divf %433, %434 : vector<2x16xf32>
    %436 = arith.mulf %427, %407 : vector<2x16xf32>
    %437 = arith.mulf %421, %429 : vector<2x16xf32>
    %438 = arith.addf %436, %437 : vector<2x16xf32>
    %439 = math.tanh %438 : vector<2x16xf32>
    %440 = arith.mulf %435, %439 : vector<2x16xf32>
    %441 = vector.extract_strided_slice %440 {offsets = [0, 0], sizes = [1, 16], strides = [1, 1]} : vector<2x16xf32> to vector<1x16xf32>
    %c5_114 = arith.constant 5 : index
    %c0_115 = arith.constant 0 : index
    %442 = vector.load %arg10[%c5_114, %c0_115] : memref<16x16xf32, #tpu.memory_space<vmem>>, vector<1x16xf32>
    tpu.vector_store %arg10[%c5_114, %c0_115], %441 {strides = array<i32>} : memref<16x16xf32, #tpu.memory_space<vmem>>, vector<1x16xf32>,
    %443 = vector.extract_strided_slice %440 {offsets = [1, 0], sizes = [1, 16], strides = [1, 1]} : vector<2x16xf32> to vector<1x16xf32>
    %c13_116 = arith.constant 13 : index
    %c0_117 = arith.constant 0 : index
    %444 = vector.load %arg10[%c13_116, %c0_117] : memref<16x16xf32, #tpu.memory_space<vmem>>, vector<1x16xf32>
    tpu.vector_store %arg10[%c13_116, %c0_117], %443 {strides = array<i32>} : memref<16x16xf32, #tpu.memory_space<vmem>>, vector<1x16xf32>,
    %cst_118 = arith.constant dense<0.000000e+00> : vector<2x64xf32>
    %445 = tpu.matmul %440, %256, %cst_118 {dimension_numbers = #tpu.dot_dimension_numbers<[1], [0], [0], [1], [0, 0, 1, 1], [], []>} : vector<2x16xf32>, vector<16x64xf32>, vector<2x64xf32> -> vector<2x64xf32>
    %446 = arith.addf %255, %445 : vector<2x64xf32>
    %447 = vector.extract_strided_slice %446 {offsets = [0, 0], sizes = [2, 16], strides = [1, 1]} : vector<2x64xf32> to vector<2x16xf32>
    %448 = arith.negf %447 : vector<2x16xf32>
    %449 = math.exp %448 : vector<2x16xf32>
    %cst_119 = arith.constant 1.000000e+00 : f32
    %450 = vector.broadcast %cst_119 : f32 to vector<2x16xf32>
    %451 = arith.addf %450, %449 : vector<2x16xf32>
    %452 = arith.divf %450, %451 : vector<2x16xf32>
    %453 = vector.extract_strided_slice %446 {offsets = [0, 16], sizes = [2, 16], strides = [1, 1]} : vector<2x64xf32> to vector<2x16xf32>
    %454 = arith.negf %453 : vector<2x16xf32>
    %455 = math.exp %454 : vector<2x16xf32>
    %cst_120 = arith.constant 1.000000e+00 : f32
    %456 = vector.broadcast %cst_120 : f32 to vector<2x16xf32>
    %457 = arith.addf %456, %455 : vector<2x16xf32>
    %458 = arith.divf %456, %457 : vector<2x16xf32>
    %459 = vector.extract_strided_slice %446 {offsets = [0, 32], sizes = [2, 16], strides = [1, 1]} : vector<2x64xf32> to vector<2x16xf32>
    %460 = math.tanh %459 : vector<2x16xf32>
    %461 = vector.extract_strided_slice %446 {offsets = [0, 48], sizes = [2, 16], strides = [1, 1]} : vector<2x64xf32> to vector<2x16xf32>
    %462 = arith.negf %461 : vector<2x16xf32>
    %463 = math.exp %462 : vector<2x16xf32>
    %cst_121 = arith.constant 1.000000e+00 : f32
    %464 = vector.broadcast %cst_121 : f32 to vector<2x16xf32>
    %465 = arith.addf %464, %463 : vector<2x16xf32>
    %466 = arith.divf %464, %465 : vector<2x16xf32>
    %467 = arith.mulf %458, %438 : vector<2x16xf32>
    %468 = arith.mulf %452, %460 : vector<2x16xf32>
    %469 = arith.addf %467, %468 : vector<2x16xf32>
    %470 = math.tanh %469 : vector<2x16xf32>
    %471 = arith.mulf %466, %470 : vector<2x16xf32>
    %472 = vector.extract_strided_slice %471 {offsets = [0, 0], sizes = [1, 16], strides = [1, 1]} : vector<2x16xf32> to vector<1x16xf32>
    %c6_122 = arith.constant 6 : index
    %c0_123 = arith.constant 0 : index
    %473 = vector.load %arg10[%c6_122, %c0_123] : memref<16x16xf32, #tpu.memory_space<vmem>>, vector<1x16xf32>
    tpu.vector_store %arg10[%c6_122, %c0_123], %472 {strides = array<i32>} : memref<16x16xf32, #tpu.memory_space<vmem>>, vector<1x16xf32>,
    %474 = vector.extract_strided_slice %471 {offsets = [1, 0], sizes = [1, 16], strides = [1, 1]} : vector<2x16xf32> to vector<1x16xf32>
    %c14_124 = arith.constant 14 : index
    %c0_125 = arith.constant 0 : index
    %475 = vector.load %arg10[%c14_124, %c0_125] : memref<16x16xf32, #tpu.memory_space<vmem>>, vector<1x16xf32>
    tpu.vector_store %arg10[%c14_124, %c0_125], %474 {strides = array<i32>} : memref<16x16xf32, #tpu.memory_space<vmem>>, vector<1x16xf32>,
    %cst_126 = arith.constant dense<0.000000e+00> : vector<2x64xf32>
    %476 = tpu.matmul %471, %256, %cst_126 {dimension_numbers = #tpu.dot_dimension_numbers<[1], [0], [0], [1], [0, 0, 1, 1], [], []>} : vector<2x16xf32>, vector<16x64xf32>, vector<2x64xf32> -> vector<2x64xf32>
    %477 = arith.addf %255, %476 : vector<2x64xf32>
    %478 = vector.extract_strided_slice %477 {offsets = [0, 0], sizes = [2, 16], strides = [1, 1]} : vector<2x64xf32> to vector<2x16xf32>
    %479 = arith.negf %478 : vector<2x16xf32>
    %480 = math.exp %479 : vector<2x16xf32>
    %cst_127 = arith.constant 1.000000e+00 : f32
    %481 = vector.broadcast %cst_127 : f32 to vector<2x16xf32>
    %482 = arith.addf %481, %480 : vector<2x16xf32>
    %483 = arith.divf %481, %482 : vector<2x16xf32>
    %484 = vector.extract_strided_slice %477 {offsets = [0, 16], sizes = [2, 16], strides = [1, 1]} : vector<2x64xf32> to vector<2x16xf32>
    %485 = arith.negf %484 : vector<2x16xf32>
    %486 = math.exp %485 : vector<2x16xf32>
    %cst_128 = arith.constant 1.000000e+00 : f32
    %487 = vector.broadcast %cst_128 : f32 to vector<2x16xf32>
    %488 = arith.addf %487, %486 : vector<2x16xf32>
    %489 = arith.divf %487, %488 : vector<2x16xf32>
    %490 = vector.extract_strided_slice %477 {offsets = [0, 32], sizes = [2, 16], strides = [1, 1]} : vector<2x64xf32> to vector<2x16xf32>
    %491 = math.tanh %490 : vector<2x16xf32>
    %492 = vector.extract_strided_slice %477 {offsets = [0, 48], sizes = [2, 16], strides = [1, 1]} : vector<2x64xf32> to vector<2x16xf32>
    %493 = arith.negf %492 : vector<2x16xf32>
    %494 = math.exp %493 : vector<2x16xf32>
    %cst_129 = arith.constant 1.000000e+00 : f32
    %495 = vector.broadcast %cst_129 : f32 to vector<2x16xf32>
    %496 = arith.addf %495, %494 : vector<2x16xf32>
    %497 = arith.divf %495, %496 : vector<2x16xf32>
    %498 = arith.mulf %489, %469 : vector<2x16xf32>
    %499 = arith.mulf %483, %491 : vector<2x16xf32>
    %500 = arith.addf %498, %499 : vector<2x16xf32>
    %501 = math.tanh %500 : vector<2x16xf32>
    %502 = arith.mulf %497, %501 : vector<2x16xf32>
    %503 = vector.extract_strided_slice %502 {offsets = [0, 0], sizes = [1, 16], strides = [1, 1]} : vector<2x16xf32> to vector<1x16xf32>
    %c7_130 = arith.constant 7 : index
    %c0_131 = arith.constant 0 : index
    %504 = vector.load %arg10[%c7_130, %c0_131] : memref<16x16xf32, #tpu.memory_space<vmem>>, vector<1x16xf32>
    tpu.vector_store %arg10[%c7_130, %c0_131], %503 {strides = array<i32>} : memref<16x16xf32, #tpu.memory_space<vmem>>, vector<1x16xf32>,
    %505 = vector.extract_strided_slice %502 {offsets = [1, 0], sizes = [1, 16], strides = [1, 1]} : vector<2x16xf32> to vector<1x16xf32>
    %c15_132 = arith.constant 15 : index
    %c0_133 = arith.constant 0 : index
    %506 = vector.load %arg10[%c15_132, %c0_133] : memref<16x16xf32, #tpu.memory_space<vmem>>, vector<1x16xf32>
    tpu.vector_store %arg10[%c15_132, %c0_133], %505 {strides = array<i32>} : memref<16x16xf32, #tpu.memory_space<vmem>>, vector<1x16xf32>,
    %c0_134 = arith.constant 0 : index
    %c0_135 = arith.constant 0 : index
    %507 = vector.load %arg10[%c0_134, %c0_135] : memref<16x16xf32, #tpu.memory_space<vmem>>, vector<16x16xf32>
    %508 = vector.shape_cast %507 : vector<16x16xf32> to vector<2x8x16xf32>
    %c0_136 = arith.constant 0 : index
    %c0_137 = arith.constant 0 : index
    %c0_138 = arith.constant 0 : index
    %509 = vector.load %arg8[%c0_136, %c0_137, %c0_138] : memref<2x8x16xf32, #tpu.memory_space<vmem>>, vector<2x8x16xf32>
    tpu.vector_store %arg8[%c0_136, %c0_137, %c0_138], %508 {strides = array<i32>} : memref<2x8x16xf32, #tpu.memory_space<vmem>>, vector<2x8x16xf32>,
    return
  }
  func.func @transform_0(%arg0: i32) -> (i32, i32, i32) {
    %c0_i32 = arith.constant 0 : i32
    %c0_i32_0 = arith.constant 0 : i32
    %c0_i32_1 = arith.constant 0 : i32
    return %arg0, %c0_i32, %c0_i32_0 : i32, i32, i32
  }
  func.func @transform_1(%arg0: i32) -> (i32, i32) {
    %c0_i32 = arith.constant 0 : i32
    %c0_i32_0 = arith.constant 0 : i32
    %c0_i32_1 = arith.constant 0 : i32
    return %c0_i32, %c0_i32_0 : i32, i32
  }
  func.func @transform_2(%arg0: i32) -> (i32, i32) {
    %c0_i32 = arith.constant 0 : i32
    %c0_i32_0 = arith.constant 0 : i32
    %c0_i32_1 = arith.constant 0 : i32
    return %c0_i32, %c0_i32_0 : i32, i32
  }
  func.func @transform_3(%arg0: i32) -> (i32, i32) {
    %c0_i32 = arith.constant 0 : i32
    %c0_i32_0 = arith.constant 0 : i32
    %c0_i32_1 = arith.constant 0 : i32
    return %c0_i32, %c0_i32_0 : i32, i32
  }
  func.func @transform_4(%arg0: i32) -> (i32, i32) {
    %c0_i32 = arith.constant 0 : i32
    %c0_i32_0 = arith.constant 0 : i32
    %c0_i32_1 = arith.constant 0 : i32
    return %c0_i32, %c0_i32_0 : i32, i32
  }
  func.func @transform_5(%arg0: i32) -> (i32, i32) {
    %c0_i32 = arith.constant 0 : i32
    %c0_i32_0 = arith.constant 0 : i32
    %c0_i32_1 = arith.constant 0 : i32
    return %c0_i32, %c0_i32_0 : i32, i32
  }
  func.func @transform_6(%arg0: i32) -> (i32, i32) {
    %c0_i32 = arith.constant 0 : i32
    %c0_i32_0 = arith.constant 0 : i32
    %c0_i32_1 = arith.constant 0 : i32
    return %c0_i32, %c0_i32_0 : i32, i32
  }
  func.func @transform_7(%arg0: i32) -> (i32, i32, i32) {
    %c0_i32 = arith.constant 0 : i32
    %c0_i32_0 = arith.constant 0 : i32
    %c0_i32_1 = arith.constant 0 : i32
    return %arg0, %c0_i32, %c0_i32_0 : i32, i32, i32
  }
}

</mosaic_0001>

<llo_original>
// kernel: tpu_custom_call.1
$region0: #{tpu_custom_call.1}
  #allocation0 [shape = 'u32[]', space=smem, size = 0x4, offset = 0x4, fixed_abs, tag = 'smem constant byte address 0x4 - core index']
  #allocation1 [shape = 'u32[144,128]{1,0:T(1,128)}', space=vmem, size = 0x12000, scoped, tag = 'internal scratch']
  #allocation2 [shape = 'f32[16,128]{1,0:T(8,128)}', space=vmem, size = 0x2000, scoped, tag = 'scratch operand']
  #allocation3 [shape = 'f32[16,16]{1,0:T(8,128)}', space=vmem, size = 0x2000, scoped, tag = 'scratch operand']
  %s0 = inlined_call_operand.hbm [shape: f32[2,8,16], index: 0, kind: input, shape index: {}]
  %s1 = inlined_call_operand.hbm [shape: f32[16,128], index: 1, kind: input, shape index: {}]
  %s2 = inlined_call_operand.hbm [shape: f32[32,128], index: 2, kind: input, shape index: {}]
  %s3 = inlined_call_operand.vmem [shape: f32[1,128], index: 3, kind: input, shape index: {}]
  %s4 = inlined_call_operand.hbm [shape: f32[32,64], index: 4, kind: input, shape index: {}]
  %s5 = inlined_call_operand.vmem [shape: f32[16,64], index: 5, kind: input, shape index: {}]
  %s6 = inlined_call_operand.vmem [shape: f32[1,64], index: 6, kind: input, shape index: {}]
  %s7 = inlined_call_operand.hbm [shape: f32[2,8,16], index: 7, kind: output, shape index: {}]
  %s8 = sld [smem:[#allocation0]]
  $region54: #{tpu_custom_call.1} parent=0
    _
  %s10 = ssub.s32 1, %s8
  %s11 = scalar_select 0, %s10, %s8
  $region1: #{tpu_custom_call.1} parent=0
    #allocation4 [shape = 'u8[8192]{0}', space=vmem, size = 0x2000, scoped, tag = 'input window, operand 0, single buffered']
    #allocation5 [shape = 's32[1]{0}', space=sflag, size = 0x4, scoped, tag = 'scoped memory for tpu_custom_call.1']
    #allocation6 [shape = 's32[1]{0}', space=sflag, size = 0x4, scoped, tag = 'scoped memory for tpu_custom_call.1']
    #allocation7 [shape = 'u8[8192]{0}', space=vmem, size = 0x2000, scoped, tag = 'input window, operand 1, single buffered']
    #allocation8 [shape = 's32[1]{0}', space=sflag, size = 0x4, scoped, tag = 'scoped memory for tpu_custom_call.1']
    #allocation9 [shape = 'u8[16384]{0}', space=vmem, size = 0x4000, scoped, tag = 'input window, operand 2, single buffered']
    #allocation10 [shape = 'u8[16384]{0}', space=vmem, size = 0x4000, scoped, tag = 'input window, operand 4, single buffered']
    #allocation11 [shape = 's32[1]{0}', space=sflag, size = 0x4, scoped, tag = 'scoped memory for tpu_custom_call.1']
    #allocation12 [shape = 'u8[8192]{0}', space=vmem, size = 0x2000, scoped, tag = 'output window, operand 0, single buffered']
    %12 = vsyncpa [#allocation5], 0
    %13 = vsyncpa [#allocation8], 0
    %14 = vsyncpa [#allocation11], 0
    %15 = vsyncpa [#allocation6], 0
    // Predicated region
    $region2: #{tpu_custom_call.1} parent=1 // pred_check
      _
    $region3: #{tpu_custom_call.1} parent=1 // pred_check_branch
      %17 = sbr.rel (0) target = $region5
    $region4: #{tpu_custom_call.1} parent=1 // pred_region
      %s19 = ssub.s32 256, 256
      %20 = vsyncadd [#allocation5], %s19
      %s21 = sshll.u32 [#allocation4], 4
      %s22 = int_to_ptr.vmem [resolvable:$true] %s21
      %27 = dma.hbm_to_vmem [thread:$0]  %s0, 256, %s22, [#allocation5], 128, 128, 8
    $region5: #{tpu_custom_call.1} parent=1 // pred_fallthru
      _
    // Predicated region
    $region6: #{tpu_custom_call.1} parent=1 // pred_check
      _
    $region7: #{tpu_custom_call.1} parent=1 // pred_check_branch
      %29 = sbr.rel (0) target = $region9
    $region8: #{tpu_custom_call.1} parent=1 // pred_region
      %s31 = ssub.s32 256, 256
      %32 = vsyncadd [#allocation8], %s31
      %s33 = sshll.u32 [#allocation7], 4
      %s34 = int_to_ptr.vmem [resolvable:$true] %s33
      %39 = dma.hbm_to_vmem [thread:$0]  %s1, 256, %s34, [#allocation8], 128, 128, 8
    $region9: #{tpu_custom_call.1} parent=1 // pred_fallthru
      _
    // Predicated region
    $region10: #{tpu_custom_call.1} parent=1 // pred_check
      _
    $region11: #{tpu_custom_call.1} parent=1 // pred_check_branch
      %41 = sbr.rel (0) target = $region13
    $region12: #{tpu_custom_call.1} parent=1 // pred_region
      %s43 = ssub.s32 512, 512
      %44 = vsyncadd [#allocation8], %s43
      %s45 = sshll.u32 [#allocation9], 4
      %s46 = int_to_ptr.vmem [resolvable:$true] %s45
      %51 = dma.hbm_to_vmem [thread:$0]  %s2, 512, %s46, [#allocation8], 128, 128, 8
    $region13: #{tpu_custom_call.1} parent=1 // pred_fallthru
      _
    // Predicated region
    $region14: #{tpu_custom_call.1} parent=1 // pred_check
      _
    $region15: #{tpu_custom_call.1} parent=1 // pred_check_branch
      %53 = sbr.rel (0) target = $region17
    $region16: #{tpu_custom_call.1} parent=1 // pred_region
      _
    $region17: #{tpu_custom_call.1} parent=1 // pred_fallthru
      _
    // Predicated region
    $region18: #{tpu_custom_call.1} parent=1 // pred_check
      _
    $region19: #{tpu_custom_call.1} parent=1 // pred_check_branch
      %55 = sbr.rel (0) target = $region21
    $region20: #{tpu_custom_call.1} parent=1 // pred_region
      %s57 = ssub.s32 512, 512
      %58 = vsyncadd [#allocation11], %s57
      %s59 = sshll.u32 [#allocation10], 4
      %s60 = int_to_ptr.vmem [resolvable:$true] %s59
      %65 = dma.hbm_to_vmem [thread:$0]  %s4, 512, %s60, [#allocation11], 128, 128, 8
    $region21: #{tpu_custom_call.1} parent=1 // pred_fallthru
      _
    // Predicated region
    $region22: #{tpu_custom_call.1} parent=1 // pred_check
      _
    $region23: #{tpu_custom_call.1} parent=1 // pred_check_branch
      %67 = sbr.rel (0) target = $region25
    $region24: #{tpu_custom_call.1} parent=1 // pred_region
      _
    $region25: #{tpu_custom_call.1} parent=1 // pred_fallthru
      _
    // Predicated region
    $region26: #{tpu_custom_call.1} parent=1 // pred_check
      _
    $region27: #{tpu_custom_call.1} parent=1 // pred_check_branch
      %69 = sbr.rel (0) target = $region29
    $region28: #{tpu_custom_call.1} parent=1 // pred_region
      _
    $region29: #{tpu_custom_call.1} parent=1 // pred_fallthru
      _
    // Predicated region
    $region30: #{tpu_custom_call.1} parent=1 // pred_check
      _
    $region31: #{tpu_custom_call.1} parent=1 // pred_check_branch
      %71 = sbr.rel (0) target = $region33
    $region32: #{tpu_custom_call.1} parent=1 // pred_region
      %72 = dma.done [#allocation5], 256
    $region33: #{tpu_custom_call.1} parent=1 // pred_fallthru
      _
    // Predicated region
    $region34: #{tpu_custom_call.1} parent=1 // pred_check
      _
    $region35: #{tpu_custom_call.1} parent=1 // pred_check_branch
      %74 = sbr.rel (0) target = $region37
    $region36: #{tpu_custom_call.1} parent=1 // pred_region
      %75 = dma.done [#allocation8], 256
    $region37: #{tpu_custom_call.1} parent=1 // pred_fallthru
      _
    // Predicated region
    $region38: #{tpu_custom_call.1} parent=1 // pred_check
      _
    $region39: #{tpu_custom_call.1} parent=1 // pred_check_branch
      %77 = sbr.rel (0) target = $region41
    $region40: #{tpu_custom_call.1} parent=1 // pred_region
      %78 = dma.done [#allocation8], 512
    $region41: #{tpu_custom_call.1} parent=1 // pred_fallthru
      _
    // Predicated region
    $region42: #{tpu_custom_call.1} parent=1 // pred_check
      _
    $region43: #{tpu_custom_call.1} parent=1 // pred_check_branch
      %80 = sbr.rel (0) target = $region45
    $region44: #{tpu_custom_call.1} parent=1 // pred_region
      %81 = dma.done [#allocation11], 512
    $region45: #{tpu_custom_call.1} parent=1 // pred_fallthru
      _
    %v82 = vld [vmem:[#allocation4] sm:$0xff]
    %v83 = vld [vmem:[#allocation4 + $0x8] sm:$0xff]
    %v84 = vld [vmem:[#allocation7] sm:$0xff]
    %v85 = vld [vmem:[#allocation7 + $0x8] sm:$0xff]
    %v86 = vld [vmem:[%s3] sm:$0x1]
    %v88 = vlaneseq
    %v89 = vshrl.u32 %v88, 7
    %v90 = vsub.s32 0, %v89
    %v91 = vrot.slane %v86, %v90
    %vm93 = vcmask 130048
    %v95 = vsel %vm93, %v82, 0
    %v98 = vsel %vm93, %v83, 0
    %100 = vmatprep.subr.mxu0 0.0
    %101 = vmatpush1.msra.mxu0 %v84
    %102 = vmatprep.subr.mxu0 0.0
    %103 = vmatpush1.msra.mxu0 %v85
    %104 = vmatprep.subr.mxu0 0.0
    %105 = vmatpush1.msra.mxu0 0.0
    %106 = vmatprep.subr.mxu0 0.0
    %107 = vmatpush1.msra.mxu0 0.0
    %108 = vmatprep.subr.mxu0 0.0
    %109 = vmatpush1.msra.mxu0 0.0
    %110 = vmatprep.subr.mxu0 0.0
    %111 = vmatpush1.msra.mxu0 0.0
    %112 = vmatprep.subr.mxu0 0.0
    %113 = vmatpush1.msra.mxu0 0.0
    %114 = vmatprep.subr.mxu0 0.0
    %115 = vmatpush1.msra.mxu0 0.0
    %116 = vmatprep.subr.mxu0 0.0
    %117 = vmatpush1.msra.mxu0 0.0
    %118 = vmatprep.subr.mxu0 0.0
    %119 = vmatpush1.msra.mxu0 0.0
    %120 = vmatprep.subr.mxu0 0.0
    %121 = vmatpush1.msra.mxu0 0.0
    %122 = vmatprep.subr.mxu0 0.0
    %123 = vmatpush1.msra.mxu0 0.0
    %124 = vmatprep.subr.mxu0 0.0
    %125 = vmatpush1.msra.mxu0 0.0
    %126 = vmatprep.subr.mxu0 0.0
    %127 = vmatpush1.msra.mxu0 0.0
    %128 = vmatprep.subr.mxu0 0.0
    %129 = vmatpush1.msra.mxu0 0.0
    %130 = vmatprep.subr.mxu0 0.0
    %131 = vmatpush1.msra.mxu0 0.0
    %132 = vmatprep.subr.mxu0 0.0
    %133 = vmatpush1.msra.mxu0 0.0
    %134 = vmatprep.subr.mxu0 0.0
    %135 = vmatpush1.msra.mxu0 0.0
    %136 = vmatprep.subr.mxu0 0.0
    %137 = vmatpush1.msra.mxu0 0.0
    %138 = vmatprep.subr.mxu0 0.0
    %139 = vmatpush1.msra.mxu0 0.0
    %140 = vmatprep.subr.mxu0 0.0
    %141 = vmatpush1.msra.mxu0 0.0
    %142 = vmatprep.subr.mxu0 0.0
    %143 = vmatpush1.msra.mxu0 0.0
    %144 = vmatprep.subr.mxu0 0.0
    %145 = vmatpush1.msra.mxu0 0.0
    %146 = vmatprep.subr.mxu0 0.0
    %147 = vmatpush1.msra.mxu0 0.0
    %148 = vmatprep.subr.mxu0 0.0
    %149 = vmatpush1.msra.mxu0 0.0
    %150 = vmatprep.subr.mxu0 0.0
    %151 = vmatpush1.msra.mxu0 0.0
    %152 = vmatprep.subr.mxu0 0.0
    %153 = vmatpush1.msra.mxu0 0.0
    %154 = vmatprep.subr.mxu0 0.0
    %155 = vmatpush1.msra.mxu0 0.0
    %156 = vmatprep.subr.mxu0 0.0
    %157 = vmatpush1.msra.mxu0 0.0
    %158 = vmatprep.subr.mxu0 0.0
    %159 = vmatpush1.msra.mxu0 0.0
    %160 = vmatprep.subr.mxu0 0.0
    %161 = vmatpush1.msra.mxu0 0.0
    %162 = vmatprep.subr.mxu0 0.0
    %163 = vmatpush1.msra.mxu0 0.0
    %164 = vmatprep.mubr.f32.mxu0 0.0
    %165 = vmatmul.mubr.f32.gmra.mrb[0].mxu0 %v95
    %v166 = vpop.f32.mrb[0].mxu0
    %v167 = vadd.f32 %v91, %v166
    %v168 = vpop.f32.mrb[0].mxu0
    %169 = vmatprep.mubr.f32.mxu0 0.0
    %170 = vmatmul.mubr.f32.gmra.mrb[0].mxu0 %v98
    %v171 = vpop.f32.mrb[0].mxu0
    %v172 = vadd.f32 %v91, %v171
    %v173 = vpop.f32.mrb[0].mxu0
    %174 = vdwg.mxu0
    %175 = vst [vmem:[#allocation2] sm:$0xff] %v167
    %176 = vst [vmem:[#allocation2 + $0x8] sm:$0xff] %v172
    %v177 = vld [vmem:[#allocation9] sm:$0xff]
    %v178 = vld [vmem:[#allocation9 + $0x8] sm:$0xff]
    %v179 = vld [vmem:[#allocation9 + $0x10] sm:$0xff]
    %v180 = vld [vmem:[#allocation9 + $0x18] sm:$0xff]
    %v181 = vld [vmem:[#allocation2] sm:$0x1]
    %v182 = vld [vmem:[#allocation2 + $0x8] sm:$0x1]
    %v184 = vrot.slane %v182, 7
    %vm186 = vcmask 1040384
    %v187 = vsel %vm186, %v181, %v184
    %vm188 = vcmask 261120
    %v190 = vsel %vm188, 0.0, 0
    %192 = vmatprep.subr.mxu0 0.0
    %193 = vmatpush1.msra.mxu0 %v177
    %194 = vmatprep.subr.mxu0 0.0
    %195 = vmatpush1.msra.mxu0 %v178
    %196 = vmatprep.subr.mxu0 0.0
    %197 = vmatpush1.msra.mxu0 %v179
    %198 = vmatprep.subr.mxu0 0.0
    %199 = vmatpush1.msra.mxu0 %v180
    %200 = vmatprep.subr.mxu0 0.0
    %201 = vmatpush1.msra.mxu0 0.0
    %202 = vmatprep.subr.mxu0 0.0
    %203 = vmatpush1.msra.mxu0 0.0
    %204 = vmatprep.subr.mxu0 0.0
    %205 = vmatpush1.msra.mxu0 0.0
    %206 = vmatprep.subr.mxu0 0.0
    %207 = vmatpush1.msra.mxu0 0.0
    %208 = vmatprep.subr.mxu0 0.0
    %209 = vmatpush1.msra.mxu0 0.0
    %210 = vmatprep.subr.mxu0 0.0
    %211 = vmatpush1.msra.mxu0 0.0
    %212 = vmatprep.subr.mxu0 0.0
    %213 = vmatpush1.msra.mxu0 0.0
    %214 = vmatprep.subr.mxu0 0.0
    %215 = vmatpush1.msra.mxu0 0.0
    %216 = vmatprep.subr.mxu0 0.0
    %217 = vmatpush1.msra.mxu0 0.0
    %218 = vmatprep.subr.mxu0 0.0
    %219 = vmatpush1.msra.mxu0 0.0
    %220 = vmatprep.subr.mxu0 0.0
    %221 = vmatpush1.msra.mxu0 0.0
    %222 = vmatprep.subr.mxu0 0.0
    %223 = vmatpush1.msra.mxu0 0.0
    %224 = vmatprep.subr.mxu0 0.0
    %225 = vmatpush1.msra.mxu0 0.0
    %226 = vmatprep.subr.mxu0 0.0
    %227 = vmatpush1.msra.mxu0 0.0
    %228 = vmatprep.subr.mxu0 0.0
    %229 = vmatpush1.msra.mxu0 0.0
    %230 = vmatprep.subr.mxu0 0.0
    %231 = vmatpush1.msra.mxu0 0.0
    %232 = vmatprep.subr.mxu0 0.0
    %233 = vmatpush1.msra.mxu0 0.0
    %234 = vmatprep.subr.mxu0 0.0
    %235 = vmatpush1.msra.mxu0 0.0
    %236 = vmatprep.subr.mxu0 0.0
    %237 = vmatpush1.msra.mxu0 0.0
    %238 = vmatprep.subr.mxu0 0.0
    %239 = vmatpush1.msra.mxu0 0.0
    %240 = vmatprep.subr.mxu0 0.0
    %241 = vmatpush1.msra.mxu0 0.0
    %242 = vmatprep.subr.mxu0 0.0
    %243 = vmatpush1.msra.mxu0 0.0
    %244 = vmatprep.subr.mxu0 0.0
    %245 = vmatpush1.msra.mxu0 0.0
    %246 = vmatprep.subr.mxu0 0.0
    %247 = vmatpush1.msra.mxu0 0.0
    %248 = vmatprep.subr.mxu0 0.0
    %249 = vmatpush1.msra.mxu0 0.0
    %250 = vmatprep.subr.mxu0 0.0
    %251 = vmatpush1.msra.mxu0 0.0
    %252 = vmatprep.subr.mxu0 0.0
    %253 = vmatpush1.msra.mxu0 0.0
    %254 = vmatprep.subr.mxu0 0.0
    %255 = vmatpush1.msra.mxu0 0.0
    %256 = vmatprep.mubr.f32.mxu0 0.0
    %257 = vmatmul.mubr.f32.gmra.mrb[0].mxu0 %v190
    %v258 = vpop.f32.mrb[0].mxu0
    %v259 = vadd.f32 0.0, %v258
    %v260 = vpop.f32.mrb[0].mxu0
    %261 = vdwg.mxu0
    %v262 = vadd.f32 %v187, %v259
    %v263 = vxor.u32 %v262, 2147483648
    %v264 = vmul.f32 %v263, 1.442695
    %v265 = vpow.pop %v264
    %v266 = vadd.f32 %v265, 1.0
    %v267 = vrcp.pop %v266
    %v268 = vmul.f32 1.0, %v267
    %v269 = vtanh.pop %v262
    %v270 = vmul.f32 %v268, 0.0
    %272 = vrot.lane.b32.xlu0 %v269, 64
    %v273 = vpop.permute.xlu0 %272
    %v275 = vmul.f32 %v268, %v273
    %277 = vrot.lane.b32.xlu0 %v275, 32
    %v278 = vpop.permute.xlu0 %277
    %v280 = vadd.f32 %v270, %v278
    %v281 = vtanh.pop %v280
    %283 = vrot.lane.b32.xlu0 %v281, 64
    %v284 = vpop.permute.xlu0 %283
    %v286 = vmul.f32 %v268, %v284
    %v287 = vld [vmem:[#allocation2 + $0x1] sm:$0x1]
    %v288 = vld [vmem:[#allocation2 + $0x9] sm:$0x1]
    %v290 = vrot.slane %v288, 7
    %v292 = vsel %vm186, %v287, %v290
    %294 = vrot.lane.b32.xlu0 %v286, 32
    %v295 = vpop.permute.xlu0 %294
    %v296 = vsel %vm188, %v295, 0
    %298 = vmatprep.subr.mxu0 0.0
    %299 = vmatpush1.msra.mxu0 %v177
    %300 = vmatprep.subr.mxu0 0.0
    %301 = vmatpush1.msra.mxu0 %v178
    %302 = vmatprep.subr.mxu0 0.0
    %303 = vmatpush1.msra.mxu0 %v179
    %304 = vmatprep.subr.mxu0 0.0
    %305 = vmatpush1.msra.mxu0 %v180
    %306 = vmatprep.subr.mxu0 0.0
    %307 = vmatpush1.msra.mxu0 0.0
    %308 = vmatprep.subr.mxu0 0.0
    %309 = vmatpush1.msra.mxu0 0.0
    %310 = vmatprep.subr.mxu0 0.0
    %311 = vmatpush1.msra.mxu0 0.0
    %312 = vmatprep.subr.mxu0 0.0
    %313 = vmatpush1.msra.mxu0 0.0
    %314 = vmatprep.subr.mxu0 0.0
    %315 = vmatpush1.msra.mxu0 0.0
    %316 = vmatprep.subr.mxu0 0.0
    %317 = vmatpush1.msra.mxu0 0.0
    %318 = vmatprep.subr.mxu0 0.0
    %319 = vmatpush1.msra.mxu0 0.0
    %320 = vmatprep.subr.mxu0 0.0
    %321 = vmatpush1.msra.mxu0 0.0
    %322 = vmatprep.subr.mxu0 0.0
    %323 = vmatpush1.msra.mxu0 0.0
    %324 = vmatprep.subr.mxu0 0.0
    %325 = vmatpush1.msra.mxu0 0.0
    %326 = vmatprep.subr.mxu0 0.0
    %327 = vmatpush1.msra.mxu0 0.0
    %328 = vmatprep.subr.mxu0 0.0
    %329 = vmatpush1.msra.mxu0 0.0
    %330 = vmatprep.subr.mxu0 0.0
    %331 = vmatpush1.msra.mxu0 0.0
    %332 = vmatprep.subr.mxu0 0.0
    %333 = vmatpush1.msra.mxu0 0.0
    %334 = vmatprep.subr.mxu0 0.0
    %335 = vmatpush1.msra.mxu0 0.0
    %336 = vmatprep.subr.mxu0 0.0
    %337 = vmatpush1.msra.mxu0 0.0
    %338 = vmatprep.subr.mxu0 0.0
    %339 = vmatpush1.msra.mxu0 0.0
    %340 = vmatprep.subr.mxu0 0.0
    %341 = vmatpush1.msra.mxu0 0.0
    %342 = vmatprep.subr.mxu0 0.0
    %343 = vmatpush1.msra.mxu0 0.0
    %344 = vmatprep.subr.mxu0 0.0
    %345 = vmatpush1.msra.mxu0 0.0
    %346 = vmatprep.subr.mxu0 0.0
    %347 = vmatpush1.msra.mxu0 0.0
    %348 = vmatprep.subr.mxu0 0.0
    %349 = vmatpush1.msra.mxu0 0.0
    %350 = vmatprep.subr.mxu0 0.0
    %351 = vmatpush1.msra.mxu0 0.0
    %352 = vmatprep.subr.mxu0 0.0
    %353 = vmatpush1.msra.mxu0 0.0
    %354 = vmatprep.subr.mxu0 0.0
    %355 = vmatpush1.msra.mxu0 0.0
    %356 = vmatprep.subr.mxu0 0.0
    %357 = vmatpush1.msra.mxu0 0.0
    %358 = vmatprep.subr.mxu0 0.0
    %359 = vmatpush1.msra.mxu0 0.0
    %360 = vmatprep.subr.mxu0 0.0
    %361 = vmatpush1.msra.mxu0 0.0
    %362 = vmatprep.mubr.f32.mxu0 0.0
    %363 = vmatmul.mubr.f32.gmra.mrb[0].mxu0 %v296
    %v364 = vpop.f32.mrb[0].mxu0
    %v365 = vadd.f32 0.0, %v364
    %v366 = vpop.f32.mrb[0].mxu0
    %367 = vdwg.mxu0
    %v368 = vadd.f32 %v292, %v365
    %v369 = vxor.u32 %v368, 2147483648
    %v370 = vmul.f32 %v369, 1.442695
    %v371 = vpow.pop %v370
    %v372 = vadd.f32 %v371, 1.0
    %v373 = vrcp.pop %v372
    %v374 = vmul.f32 1.0, %v373
    %v375 = vtanh.pop %v368
    %v376 = vmul.f32 %v374, %v280
    %378 = vrot.lane.b32.xlu0 %v375, 64
    %v379 = vpop.permute.xlu0 %378
    %v381 = vmul.f32 %v374, %v379
    %383 = vrot.lane.b32.xlu0 %v381, 32
    %v384 = vpop.permute.xlu0 %383
    %v386 = vadd.f32 %v376, %v384
    %v387 = vtanh.pop %v386
    %389 = vrot.lane.b32.xlu0 %v387, 64
    %v390 = vpop.permute.xlu0 %389
    %v392 = vmul.f32 %v374, %v390
    %v393 = vld [vmem:[#allocation2 + $0x2] sm:$0x1]
    %v394 = vld [vmem:[#allocation2 + $0xa] sm:$0x1]
    %v396 = vrot.slane %v394, 7
    %v398 = vsel %vm186, %v393, %v396
    %400 = vrot.lane.b32.xlu0 %v392, 32
    %v401 = vpop.permute.xlu0 %400
    %v402 = vsel %vm188, %v401, 0
    %404 = vmatprep.subr.mxu0 0.0
    %405 = vmatpush1.msra.mxu0 %v177
    %406 = vmatprep.subr.mxu0 0.0
    %407 = vmatpush1.msra.mxu0 %v178
    %408 = vmatprep.subr.mxu0 0.0
    %409 = vmatpush1.msra.mxu0 %v179
    %410 = vmatprep.subr.mxu0 0.0
    %411 = vmatpush1.msra.mxu0 %v180
    %412 = vmatprep.subr.mxu0 0.0
    %413 = vmatpush1.msra.mxu0 0.0
    %414 = vmatprep.subr.mxu0 0.0
    %415 = vmatpush1.msra.mxu0 0.0
    %416 = vmatprep.subr.mxu0 0.0
    %417 = vmatpush1.msra.mxu0 0.0
    %418 = vmatprep.subr.mxu0 0.0
    %419 = vmatpush1.msra.mxu0 0.0
    %420 = vmatprep.subr.mxu0 0.0
    %421 = vmatpush1.msra.mxu0 0.0
    %422 = vmatprep.subr.mxu0 0.0
    %423 = vmatpush1.msra.mxu0 0.0
    %424 = vmatprep.subr.mxu0 0.0
    %425 = vmatpush1.msra.mxu0 0.0
    %426 = vmatprep.subr.mxu0 0.0
    %427 = vmatpush1.msra.mxu0 0.0
    %428 = vmatprep.subr.mxu0 0.0
    %429 = vmatpush1.msra.mxu0 0.0
    %430 = vmatprep.subr.mxu0 0.0
    %431 = vmatpush1.msra.mxu0 0.0
    %432 = vmatprep.subr.mxu0 0.0
    %433 = vmatpush1.msra.mxu0 0.0
    %434 = vmatprep.subr.mxu0 0.0
    %435 = vmatpush1.msra.mxu0 0.0
    %436 = vmatprep.subr.mxu0 0.0
    %437 = vmatpush1.msra.mxu0 0.0
    %438 = vmatprep.subr.mxu0 0.0
    %439 = vmatpush1.msra.mxu0 0.0
    %440 = vmatprep.subr.mxu0 0.0
    %441 = vmatpush1.msra.mxu0 0.0
    %442 = vmatprep.subr.mxu0 0.0
    %443 = vmatpush1.msra.mxu0 0.0
    %444 = vmatprep.subr.mxu0 0.0
    %445 = vmatpush1.msra.mxu0 0.0
    %446 = vmatprep.subr.mxu0 0.0
    %447 = vmatpush1.msra.mxu0 0.0
    %448 = vmatprep.subr.mxu0 0.0
    %449 = vmatpush1.msra.mxu0 0.0
    %450 = vmatprep.subr.mxu0 0.0
    %451 = vmatpush1.msra.mxu0 0.0
    %452 = vmatprep.subr.mxu0 0.0
    %453 = vmatpush1.msra.mxu0 0.0
    %454 = vmatprep.subr.mxu0 0.0
    %455 = vmatpush1.msra.mxu0 0.0
    %456 = vmatprep.subr.mxu0 0.0
    %457 = vmatpush1.msra.mxu0 0.0
    %458 = vmatprep.subr.mxu0 0.0
    %459 = vmatpush1.msra.mxu0 0.0
    %460 = vmatprep.subr.mxu0 0.0
    %461 = vmatpush1.msra.mxu0 0.0
    %462 = vmatprep.subr.mxu0 0.0
    %463 = vmatpush1.msra.mxu0 0.0
    %464 = vmatprep.subr.mxu0 0.0
    %465 = vmatpush1.msra.mxu0 0.0
    %466 = vmatprep.subr.mxu0 0.0
    %467 = vmatpush1.msra.mxu0 0.0
    %468 = vmatprep.mubr.f32.mxu0 0.0
    %469 = vmatmul.mubr.f32.gmra.mrb[0].mxu0 %v402
    %v470 = vpop.f32.mrb[0].mxu0
    %v471 = vadd.f32 0.0, %v470
    %v472 = vpop.f32.mrb[0].mxu0
    %473 = vdwg.mxu0
    %v474 = vadd.f32 %v398, %v471
    %v475 = vxor.u32 %v474, 2147483648
    %v476 = vmul.f32 %v475, 1.442695
    %v477 = vpow.pop %v476
    %v478 = vadd.f32 %v477, 1.0
    %v479 = vrcp.pop %v478
    %v480 = vmul.f32 1.0, %v479
    %v481 = vtanh.pop %v474
    %v482 = vmul.f32 %v480, %v386
    %484 = vrot.lane.b32.xlu0 %v481, 64
    %v485 = vpop.permute.xlu0 %484
    %v487 = vmul.f32 %v480, %v485
    %489 = vrot.lane.b32.xlu0 %v487, 32
    %v490 = vpop.permute.xlu0 %489
    %v492 = vadd.f32 %v482, %v490
    %v493 = vtanh.pop %v492
    %495 = vrot.lane.b32.xlu0 %v493, 64
    %v496 = vpop.permute.xlu0 %495
    %v498 = vmul.f32 %v480, %v496
    %v499 = vld [vmem:[#allocation2 + $0x3] sm:$0x1]
    %v500 = vld [vmem:[#allocation2 + $0xb] sm:$0x1]
    %v502 = vrot.slane %v500, 7
    %v504 = vsel %vm186, %v499, %v502
    %506 = vrot.lane.b32.xlu0 %v498, 32
    %v507 = vpop.permute.xlu0 %506
    %v508 = vsel %vm188, %v507, 0
    %510 = vmatprep.subr.mxu0 0.0
    %511 = vmatpush1.msra.mxu0 %v177
    %512 = vmatprep.subr.mxu0 0.0
    %513 = vmatpush1.msra.mxu0 %v178
    %514 = vmatprep.subr.mxu0 0.0
    %515 = vmatpush1.msra.mxu0 %v179
    %516 = vmatprep.subr.mxu0 0.0
    %517 = vmatpush1.msra.mxu0 %v180
    %518 = vmatprep.subr.mxu0 0.0
    %519 = vmatpush1.msra.mxu0 0.0
    %520 = vmatprep.subr.mxu0 0.0
    %521 = vmatpush1.msra.mxu0 0.0
    %522 = vmatprep.subr.mxu0 0.0
    %523 = vmatpush1.msra.mxu0 0.0
    %524 = vmatprep.subr.mxu0 0.0
    %525 = vmatpush1.msra.mxu0 0.0
    %526 = vmatprep.subr.mxu0 0.0
    %527 = vmatpush1.msra.mxu0 0.0
    %528 = vmatprep.subr.mxu0 0.0
    %529 = vmatpush1.msra.mxu0 0.0
    %530 = vmatprep.subr.mxu0 0.0
    %531 = vmatpush1.msra.mxu0 0.0
    %532 = vmatprep.subr.mxu0 0.0
    %533 = vmatpush1.msra.mxu0 0.0
    %534 = vmatprep.subr.mxu0 0.0
    %535 = vmatpush1.msra.mxu0 0.0
    %536 = vmatprep.subr.mxu0 0.0
    %537 = vmatpush1.msra.mxu0 0.0
    %538 = vmatprep.subr.mxu0 0.0
    %539 = vmatpush1.msra.mxu0 0.0
    %540 = vmatprep.subr.mxu0 0.0
    %541 = vmatpush1.msra.mxu0 0.0
    %542 = vmatprep.subr.mxu0 0.0
    %543 = vmatpush1.msra.mxu0 0.0
    %544 = vmatprep.subr.mxu0 0.0
    %545 = vmatpush1.msra.mxu0 0.0
    %546 = vmatprep.subr.mxu0 0.0
    %547 = vmatpush1.msra.mxu0 0.0
    %548 = vmatprep.subr.mxu0 0.0
    %549 = vmatpush1.msra.mxu0 0.0
    %550 = vmatprep.subr.mxu0 0.0
    %551 = vmatpush1.msra.mxu0 0.0
    %552 = vmatprep.subr.mxu0 0.0
    %553 = vmatpush1.msra.mxu0 0.0
    %554 = vmatprep.subr.mxu0 0.0
    %555 = vmatpush1.msra.mxu0 0.0
    %556 = vmatprep.subr.mxu0 0.0
    %557 = vmatpush1.msra.mxu0 0.0
    %558 = vmatprep.subr.mxu0 0.0
    %559 = vmatpush1.msra.mxu0 0.0
    %560 = vmatprep.subr.mxu0 0.0
    %561 = vmatpush1.msra.mxu0 0.0
    %562 = vmatprep.subr.mxu0 0.0
    %563 = vmatpush1.msra.mxu0 0.0
    %564 = vmatprep.subr.mxu0 0.0
    %565 = vmatpush1.msra.mxu0 0.0
    %566 = vmatprep.subr.mxu0 0.0
    %567 = vmatpush1.msra.mxu0 0.0
    %568 = vmatprep.subr.mxu0 0.0
    %569 = vmatpush1.msra.mxu0 0.0
    %570 = vmatprep.subr.mxu0 0.0
    %571 = vmatpush1.msra.mxu0 0.0
    %572 = vmatprep.subr.mxu0 0.0
    %573 = vmatpush1.msra.mxu0 0.0
    %574 = vmatprep.mubr.f32.mxu0 0.0
    %575 = vmatmul.mubr.f32.gmra.mrb[0].mxu0 %v508
    %v576 = vpop.f32.mrb[0].mxu0
    %v577 = vadd.f32 0.0, %v576
    %v578 = vpop.f32.mrb[0].mxu0
    %579 = vdwg.mxu0
    %v580 = vadd.f32 %v504, %v577
    %v581 = vxor.u32 %v580, 2147483648
    %v582 = vmul.f32 %v581, 1.442695
    %v583 = vpow.pop %v582
    %v584 = vadd.f32 %v583, 1.0
    %v585 = vrcp.pop %v584
    %v586 = vmul.f32 1.0, %v585
    %v587 = vtanh.pop %v580
    %v588 = vmul.f32 %v586, %v492
    %590 = vrot.lane.b32.xlu0 %v587, 64
    %v591 = vpop.permute.xlu0 %590
    %v593 = vmul.f32 %v586, %v591
    %595 = vrot.lane.b32.xlu0 %v593, 32
    %v596 = vpop.permute.xlu0 %595
    %v598 = vadd.f32 %v588, %v596
    %v599 = vtanh.pop %v598
    %601 = vrot.lane.b32.xlu0 %v599, 64
    %v602 = vpop.permute.xlu0 %601
    %v604 = vmul.f32 %v586, %v602
    %v605 = vld [vmem:[#allocation2 + $0x4] sm:$0x1]
    %v606 = vld [vmem:[#allocation2 + $0xc] sm:$0x1]
    %v608 = vrot.slane %v606, 7
    %v610 = vsel %vm186, %v605, %v608
    %612 = vrot.lane.b32.xlu0 %v604, 32
    %v613 = vpop.permute.xlu0 %612
    %v614 = vsel %vm188, %v613, 0
    %616 = vmatprep.subr.mxu0 0.0
    %617 = vmatpush1.msra.mxu0 %v177
    %618 = vmatprep.subr.mxu0 0.0
    %619 = vmatpush1.msra.mxu0 %v178
    %620 = vmatprep.subr.mxu0 0.0
    %621 = vmatpush1.msra.mxu0 %v179
    %622 = vmatprep.subr.mxu0 0.0
    %623 = vmatpush1.msra.mxu0 %v180
    %624 = vmatprep.subr.mxu0 0.0
    %625 = vmatpush1.msra.mxu0 0.0
    %626 = vmatprep.subr.mxu0 0.0
    %627 = vmatpush1.msra.mxu0 0.0
    %628 = vmatprep.subr.mxu0 0.0
    %629 = vmatpush1.msra.mxu0 0.0
    %630 = vmatprep.subr.mxu0 0.0
    %631 = vmatpush1.msra.mxu0 0.0
    %632 = vmatprep.subr.mxu0 0.0
    %633 = vmatpush1.msra.mxu0 0.0
    %634 = vmatprep.subr.mxu0 0.0
    %635 = vmatpush1.msra.mxu0 0.0
    %636 = vmatprep.subr.mxu0 0.0
    %637 = vmatpush1.msra.mxu0 0.0
    %638 = vmatprep.subr.mxu0 0.0
    %639 = vmatpush1.msra.mxu0 0.0
    %640 = vmatprep.subr.mxu0 0.0
    %641 = vmatpush1.msra.mxu0 0.0
    %642 = vmatprep.subr.mxu0 0.0
    %643 = vmatpush1.msra.mxu0 0.0
    %644 = vmatprep.subr.mxu0 0.0
    %645 = vmatpush1.msra.mxu0 0.0
    %646 = vmatprep.subr.mxu0 0.0
    %647 = vmatpush1.msra.mxu0 0.0
    %648 = vmatprep.subr.mxu0 0.0
    %649 = vmatpush1.msra.mxu0 0.0
    %650 = vmatprep.subr.mxu0 0.0
    %651 = vmatpush1.msra.mxu0 0.0
    %652 = vmatprep.subr.mxu0 0.0
    %653 = vmatpush1.msra.mxu0 0.0
    %654 = vmatprep.subr.mxu0 0.0
    %655 = vmatpush1.msra.mxu0 0.0
    %656 = vmatprep.subr.mxu0 0.0
    %657 = vmatpush1.msra.mxu0 0.0
    %658 = vmatprep.subr.mxu0 0.0
    %659 = vmatpush1.msra.mxu0 0.0
    %660 = vmatprep.subr.mxu0 0.0
    %661 = vmatpush1.msra.mxu0 0.0
    %662 = vmatprep.subr.mxu0 0.0
    %663 = vmatpush1.msra.mxu0 0.0
    %664 = vmatprep.subr.mxu0 0.0
    %665 = vmatpush1.msra.mxu0 0.0
    %666 = vmatprep.subr.mxu0 0.0
    %667 = vmatpush1.msra.mxu0 0.0
    %668 = vmatprep.subr.mxu0 0.0
    %669 = vmatpush1.msra.mxu0 0.0
    %670 = vmatprep.subr.mxu0 0.0
    %671 = vmatpush1.msra.mxu0 0.0
    %672 = vmatprep.subr.mxu0 0.0
    %673 = vmatpush1.msra.mxu0 0.0
    %674 = vmatprep.subr.mxu0 0.0
    %675 = vmatpush1.msra.mxu0 0.0
    %676 = vmatprep.subr.mxu0 0.0
    %677 = vmatpush1.msra.mxu0 0.0
    %678 = vmatprep.subr.mxu0 0.0
    %679 = vmatpush1.msra.mxu0 0.0
    %680 = vmatprep.mubr.f32.mxu0 0.0
    %681 = vmatmul.mubr.f32.gmra.mrb[0].mxu0 %v614
    %v682 = vpop.f32.mrb[0].mxu0
    %v683 = vadd.f32 0.0, %v682
    %v684 = vpop.f32.mrb[0].mxu0
    %685 = vdwg.mxu0
    %v686 = vadd.f32 %v610, %v683
    %v687 = vxor.u32 %v686, 2147483648
    %v688 = vmul.f32 %v687, 1.442695
    %v689 = vpow.pop %v688
    %v690 = vadd.f32 %v689, 1.0
    %v691 = vrcp.pop %v690
    %v692 = vmul.f32 1.0, %v691
    %v693 = vtanh.pop %v686
    %v694 = vmul.f32 %v692, %v598
    %696 = vrot.lane.b32.xlu0 %v693, 64
    %v697 = vpop.permute.xlu0 %696
    %v699 = vmul.f32 %v692, %v697
    %701 = vrot.lane.b32.xlu0 %v699, 32
    %v702 = vpop.permute.xlu0 %701
    %v704 = vadd.f32 %v694, %v702
    %v705 = vtanh.pop %v704
    %707 = vrot.lane.b32.xlu0 %v705, 64
    %v708 = vpop.permute.xlu0 %707
    %v710 = vmul.f32 %v692, %v708
    %v711 = vld [vmem:[#allocation2 + $0x5] sm:$0x1]
    %v712 = vld [vmem:[#allocation2 + $0xd] sm:$0x1]
    %v714 = vrot.slane %v712, 7
    %v716 = vsel %vm186, %v711, %v714
    %718 = vrot.lane.b32.xlu0 %v710, 32
    %v719 = vpop.permute.xlu0 %718
    %v720 = vsel %vm188, %v719, 0
    %722 = vmatprep.subr.mxu0 0.0
    %723 = vmatpush1.msra.mxu0 %v177
    %724 = vmatprep.subr.mxu0 0.0
    %725 = vmatpush1.msra.mxu0 %v178
    %726 = vmatprep.subr.mxu0 0.0
    %727 = vmatpush1.msra.mxu0 %v179
    %728 = vmatprep.subr.mxu0 0.0
    %729 = vmatpush1.msra.mxu0 %v180
    %730 = vmatprep.subr.mxu0 0.0
    %731 = vmatpush1.msra.mxu0 0.0
    %732 = vmatprep.subr.mxu0 0.0
    %733 = vmatpush1.msra.mxu0 0.0
    %734 = vmatprep.subr.mxu0 0.0
    %735 = vmatpush1.msra.mxu0 0.0
    %736 = vmatprep.subr.mxu0 0.0
    %737 = vmatpush1.msra.mxu0 0.0
    %738 = vmatprep.subr.mxu0 0.0
    %739 = vmatpush1.msra.mxu0 0.0
    %740 = vmatprep.subr.mxu0 0.0
    %741 = vmatpush1.msra.mxu0 0.0
    %742 = vmatprep.subr.mxu0 0.0
    %743 = vmatpush1.msra.mxu0 0.0
    %744 = vmatprep.subr.mxu0 0.0
    %745 = vmatpush1.msra.mxu0 0.0
    %746 = vmatprep.subr.mxu0 0.0
    %747 = vmatpush1.msra.mxu0 0.0
    %748 = vmatprep.subr.mxu0 0.0
    %749 = vmatpush1.msra.mxu0 0.0
    %750 = vmatprep.subr.mxu0 0.0
    %751 = vmatpush1.msra.mxu0 0.0
    %752 = vmatprep.subr.mxu0 0.0
    %753 = vmatpush1.msra.mxu0 0.0
    %754 = vmatprep.subr.mxu0 0.0
    %755 = vmatpush1.msra.mxu0 0.0
    %756 = vmatprep.subr.mxu0 0.0
    %757 = vmatpush1.msra.mxu0 0.0
    %758 = vmatprep.subr.mxu0 0.0
    %759 = vmatpush1.msra.mxu0 0.0
    %760 = vmatprep.subr.mxu0 0.0
    %761 = vmatpush1.msra.mxu0 0.0
    %762 = vmatprep.subr.mxu0 0.0
    %763 = vmatpush1.msra.mxu0 0.0
    %764 = vmatprep.subr.mxu0 0.0
    %765 = vmatpush1.msra.mxu0 0.0
    %766 = vmatprep.subr.mxu0 0.0
    %767 = vmatpush1.msra.mxu0 0.0
    %768 = vmatprep.subr.mxu0 0.0
    %769 = vmatpush1.msra.mxu0 0.0
    %770 = vmatprep.subr.mxu0 0.0
    %771 = vmatpush1.msra.mxu0 0.0
    %772 = vmatprep.subr.mxu0 0.0
    %773 = vmatpush1.msra.mxu0 0.0
    %774 = vmatprep.subr.mxu0 0.0
    %775 = vmatpush1.msra.mxu0 0.0
    %776 = vmatprep.subr.mxu0 0.0
    %777 = vmatpush1.msra.mxu0 0.0
    %778 = vmatprep.subr.mxu0 0.0
    %779 = vmatpush1.msra.mxu0 0.0
    %780 = vmatprep.subr.mxu0 0.0
    %781 = vmatpush1.msra.mxu0 0.0
    %782 = vmatprep.subr.mxu0 0.0
    %783 = vmatpush1.msra.mxu0 0.0
    %784 = vmatprep.subr.mxu0 0.0
    %785 = vmatpush1.msra.mxu0 0.0
    %786 = vmatprep.mubr.f32.mxu0 0.0
    %787 = vmatmul.mubr.f32.gmra.mrb[0].mxu0 %v720
    %v788 = vpop.f32.mrb[0].mxu0
    %v789 = vadd.f32 0.0, %v788
    %v790 = vpop.f32.mrb[0].mxu0
    %791 = vdwg.mxu0
    %v792 = vadd.f32 %v716, %v789
    %v793 = vxor.u32 %v792, 2147483648
    %v794 = vmul.f32 %v793, 1.442695
    %v795 = vpow.pop %v794
    %v796 = vadd.f32 %v795, 1.0
    %v797 = vrcp.pop %v796
    %v798 = vmul.f32 1.0, %v797
    %v799 = vtanh.pop %v792
    %v800 = vmul.f32 %v798, %v704
    %802 = vrot.lane.b32.xlu0 %v799, 64
    %v803 = vpop.permute.xlu0 %802
    %v805 = vmul.f32 %v798, %v803
    %807 = vrot.lane.b32.xlu0 %v805, 32
    %v808 = vpop.permute.xlu0 %807
    %v810 = vadd.f32 %v800, %v808
    %v811 = vtanh.pop %v810
    %813 = vrot.lane.b32.xlu0 %v811, 64
    %v814 = vpop.permute.xlu0 %813
    %v816 = vmul.f32 %v798, %v814
    %v817 = vld [vmem:[#allocation2 + $0x6] sm:$0x1]
    %v818 = vld [vmem:[#allocation2 + $0xe] sm:$0x1]
    %v820 = vrot.slane %v818, 7
    %v822 = vsel %vm186, %v817, %v820
    %824 = vrot.lane.b32.xlu0 %v816, 32
    %v825 = vpop.permute.xlu0 %824
    %v826 = vsel %vm188, %v825, 0
    %828 = vmatprep.subr.mxu0 0.0
    %829 = vmatpush1.msra.mxu0 %v177
    %830 = vmatprep.subr.mxu0 0.0
    %831 = vmatpush1.msra.mxu0 %v178
    %832 = vmatprep.subr.mxu0 0.0
    %833 = vmatpush1.msra.mxu0 %v179
    %834 = vmatprep.subr.mxu0 0.0
    %835 = vmatpush1.msra.mxu0 %v180
    %836 = vmatprep.subr.mxu0 0.0
    %837 = vmatpush1.msra.mxu0 0.0
    %838 = vmatprep.subr.mxu0 0.0
    %839 = vmatpush1.msra.mxu0 0.0
    %840 = vmatprep.subr.mxu0 0.0
    %841 = vmatpush1.msra.mxu0 0.0
    %842 = vmatprep.subr.mxu0 0.0
    %843 = vmatpush1.msra.mxu0 0.0
    %844 = vmatprep.subr.mxu0 0.0
    %845 = vmatpush1.msra.mxu0 0.0
    %846 = vmatprep.subr.mxu0 0.0
    %847 = vmatpush1.msra.mxu0 0.0
    %848 = vmatprep.subr.mxu0 0.0
    %849 = vmatpush1.msra.mxu0 0.0
    %850 = vmatprep.subr.mxu0 0.0
    %851 = vmatpush1.msra.mxu0 0.0
    %852 = vmatprep.subr.mxu0 0.0
    %853 = vmatpush1.msra.mxu0 0.0
    %854 = vmatprep.subr.mxu0 0.0
    %855 = vmatpush1.msra.mxu0 0.0
    %856 = vmatprep.subr.mxu0 0.0
    %857 = vmatpush1.msra.mxu0 0.0
    %858 = vmatprep.subr.mxu0 0.0
    %859 = vmatpush1.msra.mxu0 0.0
    %860 = vmatprep.subr.mxu0 0.0
    %861 = vmatpush1.msra.mxu0 0.0
    %862 = vmatprep.subr.mxu0 0.0
    %863 = vmatpush1.msra.mxu0 0.0
    %864 = vmatprep.subr.mxu0 0.0
    %865 = vmatpush1.msra.mxu0 0.0
    %866 = vmatprep.subr.mxu0 0.0
    %867 = vmatpush1.msra.mxu0 0.0
    %868 = vmatprep.subr.mxu0 0.0
    %869 = vmatpush1.msra.mxu0 0.0
    %870 = vmatprep.subr.mxu0 0.0
    %871 = vmatpush1.msra.mxu0 0.0
    %872 = vmatprep.subr.mxu0 0.0
    %873 = vmatpush1.msra.mxu0 0.0
    %874 = vmatprep.subr.mxu0 0.0
    %875 = vmatpush1.msra.mxu0 0.0
    %876 = vmatprep.subr.mxu0 0.0
    %877 = vmatpush1.msra.mxu0 0.0
    %878 = vmatprep.subr.mxu0 0.0
    %879 = vmatpush1.msra.mxu0 0.0
    %880 = vmatprep.subr.mxu0 0.0
    %881 = vmatpush1.msra.mxu0 0.0
    %882 = vmatprep.subr.mxu0 0.0
    %883 = vmatpush1.msra.mxu0 0.0
    %884 = vmatprep.subr.mxu0 0.0
    %885 = vmatpush1.msra.mxu0 0.0
    %886 = vmatprep.subr.mxu0 0.0
    %887 = vmatpush1.msra.mxu0 0.0
    %888 = vmatprep.subr.mxu0 0.0
    %889 = vmatpush1.msra.mxu0 0.0
    %890 = vmatprep.subr.mxu0 0.0
    %891 = vmatpush1.msra.mxu0 0.0
    %892 = vmatprep.mubr.f32.mxu0 0.0
    %893 = vmatmul.mubr.f32.gmra.mrb[0].mxu0 %v826
    %v894 = vpop.f32.mrb[0].mxu0
    %v895 = vadd.f32 0.0, %v894
    %v896 = vpop.f32.mrb[0].mxu0
    %897 = vdwg.mxu0
    %v898 = vadd.f32 %v822, %v895
    %v899 = vxor.u32 %v898, 2147483648
    %v900 = vmul.f32 %v899, 1.442695
    %v901 = vpow.pop %v900
    %v902 = vadd.f32 %v901, 1.0
    %v903 = vrcp.pop %v902
    %v904 = vmul.f32 1.0, %v903
    %v905 = vtanh.pop %v898
    %v906 = vmul.f32 %v904, %v810
    %908 = vrot.lane.b32.xlu0 %v905, 64
    %v909 = vpop.permute.xlu0 %908
    %v911 = vmul.f32 %v904, %v909
    %913 = vrot.lane.b32.xlu0 %v911, 32
    %v914 = vpop.permute.xlu0 %913
    %v916 = vadd.f32 %v906, %v914
    %v917 = vtanh.pop %v916
    %919 = vrot.lane.b32.xlu0 %v917, 64
    %v920 = vpop.permute.xlu0 %919
    %v922 = vmul.f32 %v904, %v920
    %v923 = vld [vmem:[#allocation2 + $0x7] sm:$0x1]
    %v924 = vld [vmem:[#allocation2 + $0xf] sm:$0x1]
    %v926 = vrot.slane %v924, 7
    %v928 = vsel %vm186, %v923, %v926
    %930 = vrot.lane.b32.xlu0 %v922, 32
    %v931 = vpop.permute.xlu0 %930
    %v932 = vsel %vm188, %v931, 0
    %934 = vmatprep.subr.mxu0 0.0
    %935 = vmatpush1.msra.mxu0 %v177
    %936 = vmatprep.subr.mxu0 0.0
    %937 = vmatpush1.msra.mxu0 %v178
    %938 = vmatprep.subr.mxu0 0.0
    %939 = vmatpush1.msra.mxu0 %v179
    %940 = vmatprep.subr.mxu0 0.0
    %941 = vmatpush1.msra.mxu0 %v180
    %942 = vmatprep.subr.mxu0 0.0
    %943 = vmatpush1.msra.mxu0 0.0
    %944 = vmatprep.subr.mxu0 0.0
    %945 = vmatpush1.msra.mxu0 0.0
    %946 = vmatprep.subr.mxu0 0.0
    %947 = vmatpush1.msra.mxu0 0.0
    %948 = vmatprep.subr.mxu0 0.0
    %949 = vmatpush1.msra.mxu0 0.0
    %950 = vmatprep.subr.mxu0 0.0
    %951 = vmatpush1.msra.mxu0 0.0
    %952 = vmatprep.subr.mxu0 0.0
    %953 = vmatpush1.msra.mxu0 0.0
    %954 = vmatprep.subr.mxu0 0.0
    %955 = vmatpush1.msra.mxu0 0.0
    %956 = vmatprep.subr.mxu0 0.0
    %957 = vmatpush1.msra.mxu0 0.0
    %958 = vmatprep.subr.mxu0 0.0
    %959 = vmatpush1.msra.mxu0 0.0
    %960 = vmatprep.subr.mxu0 0.0
    %961 = vmatpush1.msra.mxu0 0.0
    %962 = vmatprep.subr.mxu0 0.0
    %963 = vmatpush1.msra.mxu0 0.0
    %964 = vmatprep.subr.mxu0 0.0
    %965 = vmatpush1.msra.mxu0 0.0
    %966 = vmatprep.subr.mxu0 0.0
    %967 = vmatpush1.msra.mxu0 0.0
    %968 = vmatprep.subr.mxu0 0.0
    %969 = vmatpush1.msra.mxu0 0.0
    %970 = vmatprep.subr.mxu0 0.0
    %971 = vmatpush1.msra.mxu0 0.0
    %972 = vmatprep.subr.mxu0 0.0
    %973 = vmatpush1.msra.mxu0 0.0
    %974 = vmatprep.subr.mxu0 0.0
    %975 = vmatpush1.msra.mxu0 0.0
    %976 = vmatprep.subr.mxu0 0.0
    %977 = vmatpush1.msra.mxu0 0.0
    %978 = vmatprep.subr.mxu0 0.0
    %979 = vmatpush1.msra.mxu0 0.0
    %980 = vmatprep.subr.mxu0 0.0
    %981 = vmatpush1.msra.mxu0 0.0
    %982 = vmatprep.subr.mxu0 0.0
    %983 = vmatpush1.msra.mxu0 0.0
    %984 = vmatprep.subr.mxu0 0.0
    %985 = vmatpush1.msra.mxu0 0.0
    %986 = vmatprep.subr.mxu0 0.0
    %987 = vmatpush1.msra.mxu0 0.0
    %988 = vmatprep.subr.mxu0 0.0
    %989 = vmatpush1.msra.mxu0 0.0
    %990 = vmatprep.subr.mxu0 0.0
    %991 = vmatpush1.msra.mxu0 0.0
    %992 = vmatprep.subr.mxu0 0.0
    %993 = vmatpush1.msra.mxu0 0.0
    %994 = vmatprep.subr.mxu0 0.0
    %995 = vmatpush1.msra.mxu0 0.0
    %996 = vmatprep.subr.mxu0 0.0
    %997 = vmatpush1.msra.mxu0 0.0
    %998 = vmatprep.mubr.f32.mxu0 0.0
    %999 = vmatmul.mubr.f32.gmra.mrb[0].mxu0 %v932
    %v1000 = vpop.f32.mrb[0].mxu0
    %v1001 = vadd.f32 0.0, %v1000
    %v1002 = vpop.f32.mrb[0].mxu0
    %1003 = vdwg.mxu0
    %v1004 = vadd.f32 %v928, %v1001
    %v1005 = vxor.u32 %v1004, 2147483648
    %v1006 = vmul.f32 %v1005, 1.442695
    %v1007 = vpow.pop %v1006
    %v1008 = vadd.f32 %v1007, 1.0
    %v1009 = vrcp.pop %v1008
    %v1010 = vmul.f32 1.0, %v1009
    %v1011 = vtanh.pop %v1004
    %v1012 = vmul.f32 %v1010, %v916
    %1014 = vrot.lane.b32.xlu0 %v1011, 64
    %v1015 = vpop.permute.xlu0 %1014
    %v1017 = vmul.f32 %v1010, %v1015
    %1019 = vrot.lane.b32.xlu0 %v1017, 32
    %v1020 = vpop.permute.xlu0 %1019
    %v1022 = vadd.f32 %v1012, %v1020
    %v1023 = vtanh.pop %v1022
    %1025 = vrot.lane.b32.xlu0 %v1023, 64
    %v1026 = vpop.permute.xlu0 %1025
    %v1028 = vmul.f32 %v1010, %v1026
    %v1029 = vld [vmem:[#allocation10] sm:$0xff]
    %v1030 = vld [vmem:[#allocation10 + $0x8] sm:$0xff]
    %v1031 = vld [vmem:[#allocation10 + $0x10] sm:$0xff]
    %v1032 = vld [vmem:[#allocation10 + $0x18] sm:$0xff]
    %v1033 = vld [vmem:[%s6] sm:$0x1]
    %v1035 = vlaneseq
    %v1036 = vshrl.u32 %v1035, 7
    %v1037 = vsub.s32 0, %v1036
    %v1038 = vrot.slane %v1033, %v1037
    %1041 = vrot.lane.b32.xlu0 %v1028, 32
    %v1042 = vpop.permute.xlu0 %1041
    %v1043 = vsel %vm188, %v1042, 0
    %1045 = vmatprep.subr.mxu0 0.0
    %1046 = vmatpush1.msra.mxu0 %v1029
    %1047 = vmatprep.subr.mxu0 0.0
    %1048 = vmatpush1.msra.mxu0 %v1030
    %1049 = vmatprep.subr.mxu0 0.0
    %1050 = vmatpush1.msra.mxu0 %v1031
    %1051 = vmatprep.subr.mxu0 0.0
    %1052 = vmatpush1.msra.mxu0 %v1032
    %1053 = vmatprep.subr.mxu0 0.0
    %1054 = vmatpush1.msra.mxu0 0.0
    %1055 = vmatprep.subr.mxu0 0.0
    %1056 = vmatpush1.msra.mxu0 0.0
    %1057 = vmatprep.subr.mxu0 0.0
    %1058 = vmatpush1.msra.mxu0 0.0
    %1059 = vmatprep.subr.mxu0 0.0
    %1060 = vmatpush1.msra.mxu0 0.0
    %1061 = vmatprep.subr.mxu0 0.0
    %1062 = vmatpush1.msra.mxu0 0.0
    %1063 = vmatprep.subr.mxu0 0.0
    %1064 = vmatpush1.msra.mxu0 0.0
    %1065 = vmatprep.subr.mxu0 0.0
    %1066 = vmatpush1.msra.mxu0 0.0
    %1067 = vmatprep.subr.mxu0 0.0
    %1068 = vmatpush1.msra.mxu0 0.0
    %1069 = vmatprep.subr.mxu0 0.0
    %1070 = vmatpush1.msra.mxu0 0.0
    %1071 = vmatprep.subr.mxu0 0.0
    %1072 = vmatpush1.msra.mxu0 0.0
    %1073 = vmatprep.subr.mxu0 0.0
    %1074 = vmatpush1.msra.mxu0 0.0
    %1075 = vmatprep.subr.mxu0 0.0
    %1076 = vmatpush1.msra.mxu0 0.0
    %1077 = vmatprep.subr.mxu0 0.0
    %1078 = vmatpush1.msra.mxu0 0.0
    %1079 = vmatprep.subr.mxu0 0.0
    %1080 = vmatpush1.msra.mxu0 0.0
    %1081 = vmatprep.subr.mxu0 0.0
    %1082 = vmatpush1.msra.mxu0 0.0
    %1083 = vmatprep.subr.mxu0 0.0
    %1084 = vmatpush1.msra.mxu0 0.0
    %1085 = vmatprep.subr.mxu0 0.0
    %1086 = vmatpush1.msra.mxu0 0.0
    %1087 = vmatprep.subr.mxu0 0.0
    %1088 = vmatpush1.msra.mxu0 0.0
    %1089 = vmatprep.subr.mxu0 0.0
    %1090 = vmatpush1.msra.mxu0 0.0
    %1091 = vmatprep.subr.mxu0 0.0
    %1092 = vmatpush1.msra.mxu0 0.0
    %1093 = vmatprep.subr.mxu0 0.0
    %1094 = vmatpush1.msra.mxu0 0.0
    %1095 = vmatprep.subr.mxu0 0.0
    %1096 = vmatpush1.msra.mxu0 0.0
    %1097 = vmatprep.subr.mxu0 0.0
    %1098 = vmatpush1.msra.mxu0 0.0
    %1099 = vmatprep.subr.mxu0 0.0
    %1100 = vmatpush1.msra.mxu0 0.0
    %1101 = vmatprep.subr.mxu0 0.0
    %1102 = vmatpush1.msra.mxu0 0.0
    %1103 = vmatprep.subr.mxu0 0.0
    %1104 = vmatpush1.msra.mxu0 0.0
    %1105 = vmatprep.subr.mxu0 0.0
    %1106 = vmatpush1.msra.mxu0 0.0
    %1107 = vmatprep.subr.mxu0 0.0
    %1108 = vmatpush1.msra.mxu0 0.0
    %1109 = vmatprep.mubr.f32.mxu0 0.0
    %1110 = vmatmul.mubr.f32.gmra.mrb[0].mxu0 %v1043
    %v1111 = vpop.f32.mrb[0].mxu0
    %v1112 = vadd.f32 %v1038, %v1111
    %v1113 = vpop.f32.mrb[0].mxu0
    %1114 = vdwg.mxu0
    %v1115 = vld [vmem:[%s5] sm:$0xff]
    %v1116 = vld [vmem:[%s5 + $0x8] sm:$0xff]
    %v1117 = vsel %vm93, 0.0, 0
    %1119 = vmatprep.subr.mxu0 0.0
    %1120 = vmatpush1.msra.mxu0 %v1115
    %1121 = vmatprep.subr.mxu0 0.0
    %1122 = vmatpush1.msra.mxu0 %v1116
    %1123 = vmatprep.subr.mxu0 0.0
    %1124 = vmatpush1.msra.mxu0 0.0
    %1125 = vmatprep.subr.mxu0 0.0
    %1126 = vmatpush1.msra.mxu0 0.0
    %1127 = vmatprep.subr.mxu0 0.0
    %1128 = vmatpush1.msra.mxu0 0.0
    %1129 = vmatprep.subr.mxu0 0.0
    %1130 = vmatpush1.msra.mxu0 0.0
    %1131 = vmatprep.subr.mxu0 0.0
    %1132 = vmatpush1.msra.mxu0 0.0
    %1133 = vmatprep.subr.mxu0 0.0
    %1134 = vmatpush1.msra.mxu0 0.0
    %1135 = vmatprep.subr.mxu0 0.0
    %1136 = vmatpush1.msra.mxu0 0.0
    %1137 = vmatprep.subr.mxu0 0.0
    %1138 = vmatpush1.msra.mxu0 0.0
    %1139 = vmatprep.subr.mxu0 0.0
    %1140 = vmatpush1.msra.mxu0 0.0
    %1141 = vmatprep.subr.mxu0 0.0
    %1142 = vmatpush1.msra.mxu0 0.0
    %1143 = vmatprep.subr.mxu0 0.0
    %1144 = vmatpush1.msra.mxu0 0.0
    %1145 = vmatprep.subr.mxu0 0.0
    %1146 = vmatpush1.msra.mxu0 0.0
    %1147 = vmatprep.subr.mxu0 0.0
    %1148 = vmatpush1.msra.mxu0 0.0
    %1149 = vmatprep.subr.mxu0 0.0
    %1150 = vmatpush1.msra.mxu0 0.0
    %1151 = vmatprep.subr.mxu0 0.0
    %1152 = vmatpush1.msra.mxu0 0.0
    %1153 = vmatprep.subr.mxu0 0.0
    %1154 = vmatpush1.msra.mxu0 0.0
    %1155 = vmatprep.subr.mxu0 0.0
    %1156 = vmatpush1.msra.mxu0 0.0
    %1157 = vmatprep.subr.mxu0 0.0
    %1158 = vmatpush1.msra.mxu0 0.0
    %1159 = vmatprep.subr.mxu0 0.0
    %1160 = vmatpush1.msra.mxu0 0.0
    %1161 = vmatprep.subr.mxu0 0.0
    %1162 = vmatpush1.msra.mxu0 0.0
    %1163 = vmatprep.subr.mxu0 0.0
    %1164 = vmatpush1.msra.mxu0 0.0
    %1165 = vmatprep.subr.mxu0 0.0
    %1166 = vmatpush1.msra.mxu0 0.0
    %1167 = vmatprep.subr.mxu0 0.0
    %1168 = vmatpush1.msra.mxu0 0.0
    %1169 = vmatprep.subr.mxu0 0.0
    %1170 = vmatpush1.msra.mxu0 0.0
    %1171 = vmatprep.subr.mxu0 0.0
    %1172 = vmatpush1.msra.mxu0 0.0
    %1173 = vmatprep.subr.mxu0 0.0
    %1174 = vmatpush1.msra.mxu0 0.0
    %1175 = vmatprep.subr.mxu0 0.0
    %1176 = vmatpush1.msra.mxu0 0.0
    %1177 = vmatprep.subr.mxu0 0.0
    %1178 = vmatpush1.msra.mxu0 0.0
    %1179 = vmatprep.subr.mxu0 0.0
    %1180 = vmatpush1.msra.mxu0 0.0
    %1181 = vmatprep.subr.mxu0 0.0
    %1182 = vmatpush1.msra.mxu0 0.0
    %1183 = vmatprep.mubr.f32.mxu0 0.0
    %1184 = vmatmul.mubr.f32.gmra.mrb[0].mxu0 %v1117
    %v1185 = vpop.f32.mrb[0].mxu0
    %v1186 = vadd.f32 0.0, %v1185
    %v1187 = vpop.f32.mrb[0].mxu0
    %1188 = vdwg.mxu0
    %v1189 = vadd.f32 %v1112, %v1186
    %v1190 = vxor.u32 %v1189, 2147483648
    %v1191 = vmul.f32 %v1190, 1.442695
    %v1192 = vpow.pop %v1191
    %v1193 = vadd.f32 %v1192, 1.0
    %v1194 = vrcp.pop %v1193
    %v1195 = vmul.f32 1.0, %v1194
    %v1196 = vtanh.pop %v1189
    %v1197 = vmul.f32 %v1195, 0.0
    %1199 = vrot.lane.b32.xlu0 %v1196, 96
    %v1200 = vpop.permute.xlu0 %1199
    %v1202 = vmul.f32 %v1195, %v1200
    %1204 = vrot.lane.b32.xlu0 %v1202, 16
    %v1205 = vpop.permute.xlu0 %1204
    %v1207 = vadd.f32 %v1197, %v1205
    %v1208 = vtanh.pop %v1207
    %1210 = vrot.lane.b32.xlu0 %v1208, 32
    %v1211 = vpop.permute.xlu0 %1210
    %v1213 = vmul.f32 %v1195, %v1211
    %1215 = vrot.lane.b32.xlu0 %v1213, 80
    %v1216 = vpop.permute.xlu0 %1215
    %vm1218 = vcmask 122880
    %1219 = vst.msk [vmem:[#allocation3] sm:$0x1] %vm1218, %v1216
    %vm1220 = vcmask 123905
    %1221 = vst.msk [vmem:[#allocation3 + $0x7] sm:$0x2] %vm1220, %v1216
    %v1222 = vsel %vm93, %v1216, 0
    %1224 = vmatprep.subr.mxu0 0.0
    %1225 = vmatpush1.msra.mxu0 %v1115
    %1226 = vmatprep.subr.mxu0 0.0
    %1227 = vmatpush1.msra.mxu0 %v1116
    %1228 = vmatprep.subr.mxu0 0.0
    %1229 = vmatpush1.msra.mxu0 0.0
    %1230 = vmatprep.subr.mxu0 0.0
    %1231 = vmatpush1.msra.mxu0 0.0
    %1232 = vmatprep.subr.mxu0 0.0
    %1233 = vmatpush1.msra.mxu0 0.0
    %1234 = vmatprep.subr.mxu0 0.0
    %1235 = vmatpush1.msra.mxu0 0.0
    %1236 = vmatprep.subr.mxu0 0.0
    %1237 = vmatpush1.msra.mxu0 0.0
    %1238 = vmatprep.subr.mxu0 0.0
    %1239 = vmatpush1.msra.mxu0 0.0
    %1240 = vmatprep.subr.mxu0 0.0
    %1241 = vmatpush1.msra.mxu0 0.0
    %1242 = vmatprep.subr.mxu0 0.0
    %1243 = vmatpush1.msra.mxu0 0.0
    %1244 = vmatprep.subr.mxu0 0.0
    %1245 = vmatpush1.msra.mxu0 0.0
    %1246 = vmatprep.subr.mxu0 0.0
    %1247 = vmatpush1.msra.mxu0 0.0
    %1248 = vmatprep.subr.mxu0 0.0
    %1249 = vmatpush1.msra.mxu0 0.0
    %1250 = vmatprep.subr.mxu0 0.0
    %1251 = vmatpush1.msra.mxu0 0.0
    %1252 = vmatprep.subr.mxu0 0.0
    %1253 = vmatpush1.msra.mxu0 0.0
    %1254 = vmatprep.subr.mxu0 0.0
    %1255 = vmatpush1.msra.mxu0 0.0
    %1256 = vmatprep.subr.mxu0 0.0
    %1257 = vmatpush1.msra.mxu0 0.0
    %1258 = vmatprep.subr.mxu0 0.0
    %1259 = vmatpush1.msra.mxu0 0.0
    %1260 = vmatprep.subr.mxu0 0.0
    %1261 = vmatpush1.msra.mxu0 0.0
    %1262 = vmatprep.subr.mxu0 0.0
    %1263 = vmatpush1.msra.mxu0 0.0
    %1264 = vmatprep.subr.mxu0 0.0
    %1265 = vmatpush1.msra.mxu0 0.0
    %1266 = vmatprep.subr.mxu0 0.0
    %1267 = vmatpush1.msra.mxu0 0.0
    %1268 = vmatprep.subr.mxu0 0.0
    %1269 = vmatpush1.msra.mxu0 0.0
    %1270 = vmatprep.subr.mxu0 0.0
    %1271 = vmatpush1.msra.mxu0 0.0
    %1272 = vmatprep.subr.mxu0 0.0
    %1273 = vmatpush1.msra.mxu0 0.0
    %1274 = vmatprep.subr.mxu0 0.0
    %1275 = vmatpush1.msra.mxu0 0.0
    %1276 = vmatprep.subr.mxu0 0.0
    %1277 = vmatpush1.msra.mxu0 0.0
    %1278 = vmatprep.subr.mxu0 0.0
    %1279 = vmatpush1.msra.mxu0 0.0
    %1280 = vmatprep.subr.mxu0 0.0
    %1281 = vmatpush1.msra.mxu0 0.0
    %1282 = vmatprep.subr.mxu0 0.0
    %1283 = vmatpush1.msra.mxu0 0.0
    %1284 = vmatprep.subr.mxu0 0.0
    %1285 = vmatpush1.msra.mxu0 0.0
    %1286 = vmatprep.subr.mxu0 0.0
    %1287 = vmatpush1.msra.mxu0 0.0
    %1288 = vmatprep.mubr.f32.mxu0 0.0
    %1289 = vmatmul.mubr.f32.gmra.mrb[0].mxu0 %v1222
    %v1290 = vpop.f32.mrb[0].mxu0
    %v1291 = vadd.f32 0.0, %v1290
    %v1292 = vpop.f32.mrb[0].mxu0
    %1293 = vdwg.mxu0
    %v1294 = vadd.f32 %v1112, %v1291
    %v1295 = vxor.u32 %v1294, 2147483648
    %v1296 = vmul.f32 %v1295, 1.442695
    %v1297 = vpow.pop %v1296
    %v1298 = vadd.f32 %v1297, 1.0
    %v1299 = vrcp.pop %v1298
    %v1300 = vmul.f32 1.0, %v1299
    %v1301 = vtanh.pop %v1294
    %v1302 = vmul.f32 %v1300, %v1207
    %1304 = vrot.lane.b32.xlu0 %v1301, 96
    %v1305 = vpop.permute.xlu0 %1304
    %v1307 = vmul.f32 %v1300, %v1305
    %1309 = vrot.lane.b32.xlu0 %v1307, 16
    %v1310 = vpop.permute.xlu0 %1309
    %v1312 = vadd.f32 %v1302, %v1310
    %v1313 = vtanh.pop %v1312
    %1315 = vrot.lane.b32.xlu0 %v1313, 32
    %v1316 = vpop.permute.xlu0 %1315
    %v1318 = vmul.f32 %v1300, %v1316
    %1320 = vrot.lane.b32.xlu0 %v1318, 80
    %v1321 = vpop.permute.xlu0 %1320
    %1323 = vst.msk [vmem:[#allocation3 + $0x1] sm:$0x1] %vm1218, %v1321
    %1324 = vst.msk [vmem:[#allocation3 + $0x8] sm:$0x2] %vm1220, %v1321
    %v1325 = vsel %vm93, %v1321, 0
    %1327 = vmatprep.subr.mxu0 0.0
    %1328 = vmatpush1.msra.mxu0 %v1115
    %1329 = vmatprep.subr.mxu0 0.0
    %1330 = vmatpush1.msra.mxu0 %v1116
    %1331 = vmatprep.subr.mxu0 0.0
    %1332 = vmatpush1.msra.mxu0 0.0
    %1333 = vmatprep.subr.mxu0 0.0
    %1334 = vmatpush1.msra.mxu0 0.0
    %1335 = vmatprep.subr.mxu0 0.0
    %1336 = vmatpush1.msra.mxu0 0.0
    %1337 = vmatprep.subr.mxu0 0.0
    %1338 = vmatpush1.msra.mxu0 0.0
    %1339 = vmatprep.subr.mxu0 0.0
    %1340 = vmatpush1.msra.mxu0 0.0
    %1341 = vmatprep.subr.mxu0 0.0
    %1342 = vmatpush1.msra.mxu0 0.0
    %1343 = vmatprep.subr.mxu0 0.0
    %1344 = vmatpush1.msra.mxu0 0.0
    %1345 = vmatprep.subr.mxu0 0.0
    %1346 = vmatpush1.msra.mxu0 0.0
    %1347 = vmatprep.subr.mxu0 0.0
    %1348 = vmatpush1.msra.mxu0 0.0
    %1349 = vmatprep.subr.mxu0 0.0
    %1350 = vmatpush1.msra.mxu0 0.0
    %1351 = vmatprep.subr.mxu0 0.0
    %1352 = vmatpush1.msra.mxu0 0.0
    %1353 = vmatprep.subr.mxu0 0.0
    %1354 = vmatpush1.msra.mxu0 0.0
    %1355 = vmatprep.subr.mxu0 0.0
    %1356 = vmatpush1.msra.mxu0 0.0
    %1357 = vmatprep.subr.mxu0 0.0
    %1358 = vmatpush1.msra.mxu0 0.0
    %1359 = vmatprep.subr.mxu0 0.0
    %1360 = vmatpush1.msra.mxu0 0.0
    %1361 = vmatprep.subr.mxu0 0.0
    %1362 = vmatpush1.msra.mxu0 0.0
    %1363 = vmatprep.subr.mxu0 0.0
    %1364 = vmatpush1.msra.mxu0 0.0
    %1365 = vmatprep.subr.mxu0 0.0
    %1366 = vmatpush1.msra.mxu0 0.0
    %1367 = vmatprep.subr.mxu0 0.0
    %1368 = vmatpush1.msra.mxu0 0.0
    %1369 = vmatprep.subr.mxu0 0.0
    %1370 = vmatpush1.msra.mxu0 0.0
    %1371 = vmatprep.subr.mxu0 0.0
    %1372 = vmatpush1.msra.mxu0 0.0
    %1373 = vmatprep.subr.mxu0 0.0
    %1374 = vmatpush1.msra.mxu0 0.0
    %1375 = vmatprep.subr.mxu0 0.0
    %1376 = vmatpush1.msra.mxu0 0.0
    %1377 = vmatprep.subr.mxu0 0.0
    %1378 = vmatpush1.msra.mxu0 0.0
    %1379 = vmatprep.subr.mxu0 0.0
    %1380 = vmatpush1.msra.mxu0 0.0
    %1381 = vmatprep.subr.mxu0 0.0
    %1382 = vmatpush1.msra.mxu0 0.0
    %1383 = vmatprep.subr.mxu0 0.0
    %1384 = vmatpush1.msra.mxu0 0.0
    %1385 = vmatprep.subr.mxu0 0.0
    %1386 = vmatpush1.msra.mxu0 0.0
    %1387 = vmatprep.subr.mxu0 0.0
    %1388 = vmatpush1.msra.mxu0 0.0
    %1389 = vmatprep.subr.mxu0 0.0
    %1390 = vmatpush1.msra.mxu0 0.0
    %1391 = vmatprep.mubr.f32.mxu0 0.0
    %1392 = vmatmul.mubr.f32.gmra.mrb[0].mxu0 %v1325
    %v1393 = vpop.f32.mrb[0].mxu0
    %v1394 = vadd.f32 0.0, %v1393
    %v1395 = vpop.f32.mrb[0].mxu0
    %1396 = vdwg.mxu0
    %v1397 = vadd.f32 %v1112, %v1394
    %v1398 = vxor.u32 %v1397, 2147483648
    %v1399 = vmul.f32 %v1398, 1.442695
    %v1400 = vpow.pop %v1399
    %v1401 = vadd.f32 %v1400, 1.0
    %v1402 = vrcp.pop %v1401
    %v1403 = vmul.f32 1.0, %v1402
    %v1404 = vtanh.pop %v1397
    %v1405 = vmul.f32 %v1403, %v1312
    %1407 = vrot.lane.b32.xlu0 %v1404, 96
    %v1408 = vpop.permute.xlu0 %1407
    %v1410 = vmul.f32 %v1403, %v1408
    %1412 = vrot.lane.b32.xlu0 %v1410, 16
    %v1413 = vpop.permute.xlu0 %1412
    %v1415 = vadd.f32 %v1405, %v1413
    %v1416 = vtanh.pop %v1415
    %1418 = vrot.lane.b32.xlu0 %v1416, 32
    %v1419 = vpop.permute.xlu0 %1418
    %v1421 = vmul.f32 %v1403, %v1419
    %1423 = vrot.lane.b32.xlu0 %v1421, 80
    %v1424 = vpop.permute.xlu0 %1423
    %1426 = vst.msk [vmem:[#allocation3 + $0x2] sm:$0x1] %vm1218, %v1424
    %1427 = vst.msk [vmem:[#allocation3 + $0x9] sm:$0x2] %vm1220, %v1424
    %v1428 = vsel %vm93, %v1424, 0
    %1430 = vmatprep.subr.mxu0 0.0
    %1431 = vmatpush1.msra.mxu0 %v1115
    %1432 = vmatprep.subr.mxu0 0.0
    %1433 = vmatpush1.msra.mxu0 %v1116
    %1434 = vmatprep.subr.mxu0 0.0
    %1435 = vmatpush1.msra.mxu0 0.0
    %1436 = vmatprep.subr.mxu0 0.0
    %1437 = vmatpush1.msra.mxu0 0.0
    %1438 = vmatprep.subr.mxu0 0.0
    %1439 = vmatpush1.msra.mxu0 0.0
    %1440 = vmatprep.subr.mxu0 0.0
    %1441 = vmatpush1.msra.mxu0 0.0
    %1442 = vmatprep.subr.mxu0 0.0
    %1443 = vmatpush1.msra.mxu0 0.0
    %1444 = vmatprep.subr.mxu0 0.0
    %1445 = vmatpush1.msra.mxu0 0.0
    %1446 = vmatprep.subr.mxu0 0.0
    %1447 = vmatpush1.msra.mxu0 0.0
    %1448 = vmatprep.subr.mxu0 0.0
    %1449 = vmatpush1.msra.mxu0 0.0
    %1450 = vmatprep.subr.mxu0 0.0
    %1451 = vmatpush1.msra.mxu0 0.0
    %1452 = vmatprep.subr.mxu0 0.0
    %1453 = vmatpush1.msra.mxu0 0.0
    %1454 = vmatprep.subr.mxu0 0.0
    %1455 = vmatpush1.msra.mxu0 0.0
    %1456 = vmatprep.subr.mxu0 0.0
    %1457 = vmatpush1.msra.mxu0 0.0
    %1458 = vmatprep.subr.mxu0 0.0
    %1459 = vmatpush1.msra.mxu0 0.0
    %1460 = vmatprep.subr.mxu0 0.0
    %1461 = vmatpush1.msra.mxu0 0.0
    %1462 = vmatprep.subr.mxu0 0.0
    %1463 = vmatpush1.msra.mxu0 0.0
    %1464 = vmatprep.subr.mxu0 0.0
    %1465 = vmatpush1.msra.mxu0 0.0
    %1466 = vmatprep.subr.mxu0 0.0
    %1467 = vmatpush1.msra.mxu0 0.0
    %1468 = vmatprep.subr.mxu0 0.0
    %1469 = vmatpush1.msra.mxu0 0.0
    %1470 = vmatprep.subr.mxu0 0.0
    %1471 = vmatpush1.msra.mxu0 0.0
    %1472 = vmatprep.subr.mxu0 0.0
    %1473 = vmatpush1.msra.mxu0 0.0
    %1474 = vmatprep.subr.mxu0 0.0
    %1475 = vmatpush1.msra.mxu0 0.0
    %1476 = vmatprep.subr.mxu0 0.0
    %1477 = vmatpush1.msra.mxu0 0.0
    %1478 = vmatprep.subr.mxu0 0.0
    %1479 = vmatpush1.msra.mxu0 0.0
    %1480 = vmatprep.subr.mxu0 0.0
    %1481 = vmatpush1.msra.mxu0 0.0
    %1482 = vmatprep.subr.mxu0 0.0
    %1483 = vmatpush1.msra.mxu0 0.0
    %1484 = vmatprep.subr.mxu0 0.0
    %1485 = vmatpush1.msra.mxu0 0.0
    %1486 = vmatprep.subr.mxu0 0.0
    %1487 = vmatpush1.msra.mxu0 0.0
    %1488 = vmatprep.subr.mxu0 0.0
    %1489 = vmatpush1.msra.mxu0 0.0
    %1490 = vmatprep.subr.mxu0 0.0
    %1491 = vmatpush1.msra.mxu0 0.0
    %1492 = vmatprep.subr.mxu0 0.0
    %1493 = vmatpush1.msra.mxu0 0.0
    %1494 = vmatprep.mubr.f32.mxu0 0.0
    %1495 = vmatmul.mubr.f32.gmra.mrb[0].mxu0 %v1428
    %v1496 = vpop.f32.mrb[0].mxu0
    %v1497 = vadd.f32 0.0, %v1496
    %v1498 = vpop.f32.mrb[0].mxu0
    %1499 = vdwg.mxu0
    %v1500 = vadd.f32 %v1112, %v1497
    %v1501 = vxor.u32 %v1500, 2147483648
    %v1502 = vmul.f32 %v1501, 1.442695
    %v1503 = vpow.pop %v1502
    %v1504 = vadd.f32 %v1503, 1.0
    %v1505 = vrcp.pop %v1504
    %v1506 = vmul.f32 1.0, %v1505
    %v1507 = vtanh.pop %v1500
    %v1508 = vmul.f32 %v1506, %v1415
    %1510 = vrot.lane.b32.xlu0 %v1507, 96
    %v1511 = vpop.permute.xlu0 %1510
    %v1513 = vmul.f32 %v1506, %v1511
    %1515 = vrot.lane.b32.xlu0 %v1513, 16
    %v1516 = vpop.permute.xlu0 %1515
    %v1518 = vadd.f32 %v1508, %v1516
    %v1519 = vtanh.pop %v1518
    %1521 = vrot.lane.b32.xlu0 %v1519, 32
    %v1522 = vpop.permute.xlu0 %1521
    %v1524 = vmul.f32 %v1506, %v1522
    %1526 = vrot.lane.b32.xlu0 %v1524, 80
    %v1527 = vpop.permute.xlu0 %1526
    %1529 = vst.msk [vmem:[#allocation3 + $0x3] sm:$0x1] %vm1218, %v1527
    %1530 = vst.msk [vmem:[#allocation3 + $0xa] sm:$0x2] %vm1220, %v1527
    %v1531 = vsel %vm93, %v1527, 0
    %1533 = vmatprep.subr.mxu0 0.0
    %1534 = vmatpush1.msra.mxu0 %v1115
    %1535 = vmatprep.subr.mxu0 0.0
    %1536 = vmatpush1.msra.mxu0 %v1116
    %1537 = vmatprep.subr.mxu0 0.0
    %1538 = vmatpush1.msra.mxu0 0.0
    %1539 = vmatprep.subr.mxu0 0.0
    %1540 = vmatpush1.msra.mxu0 0.0
    %1541 = vmatprep.subr.mxu0 0.0
    %1542 = vmatpush1.msra.mxu0 0.0
    %1543 = vmatprep.subr.mxu0 0.0
    %1544 = vmatpush1.msra.mxu0 0.0
    %1545 = vmatprep.subr.mxu0 0.0
    %1546 = vmatpush1.msra.mxu0 0.0
    %1547 = vmatprep.subr.mxu0 0.0
    %1548 = vmatpush1.msra.mxu0 0.0
    %1549 = vmatprep.subr.mxu0 0.0
    %1550 = vmatpush1.msra.mxu0 0.0
    %1551 = vmatprep.subr.mxu0 0.0
    %1552 = vmatpush1.msra.mxu0 0.0
    %1553 = vmatprep.subr.mxu0 0.0
    %1554 = vmatpush1.msra.mxu0 0.0
    %1555 = vmatprep.subr.mxu0 0.0
    %1556 = vmatpush1.msra.mxu0 0.0
    %1557 = vmatprep.subr.mxu0 0.0
    %1558 = vmatpush1.msra.mxu0 0.0
    %1559 = vmatprep.subr.mxu0 0.0
    %1560 = vmatpush1.msra.mxu0 0.0
    %1561 = vmatprep.subr.mxu0 0.0
    %1562 = vmatpush1.msra.mxu0 0.0
    %1563 = vmatprep.subr.mxu0 0.0
    %1564 = vmatpush1.msra.mxu0 0.0
    %1565 = vmatprep.subr.mxu0 0.0
    %1566 = vmatpush1.msra.mxu0 0.0
    %1567 = vmatprep.subr.mxu0 0.0
    %1568 = vmatpush1.msra.mxu0 0.0
    %1569 = vmatprep.subr.mxu0 0.0
    %1570 = vmatpush1.msra.mxu0 0.0
    %1571 = vmatprep.subr.mxu0 0.0
    %1572 = vmatpush1.msra.mxu0 0.0
    %1573 = vmatprep.subr.mxu0 0.0
    %1574 = vmatpush1.msra.mxu0 0.0
    %1575 = vmatprep.subr.mxu0 0.0
    %1576 = vmatpush1.msra.mxu0 0.0
    %1577 = vmatprep.subr.mxu0 0.0
    %1578 = vmatpush1.msra.mxu0 0.0
    %1579 = vmatprep.subr.mxu0 0.0
    %1580 = vmatpush1.msra.mxu0 0.0
    %1581 = vmatprep.subr.mxu0 0.0
    %1582 = vmatpush1.msra.mxu0 0.0
    %1583 = vmatprep.subr.mxu0 0.0
    %1584 = vmatpush1.msra.mxu0 0.0
    %1585 = vmatprep.subr.mxu0 0.0
    %1586 = vmatpush1.msra.mxu0 0.0
    %1587 = vmatprep.subr.mxu0 0.0
    %1588 = vmatpush1.msra.mxu0 0.0
    %1589 = vmatprep.subr.mxu0 0.0
    %1590 = vmatpush1.msra.mxu0 0.0
    %1591 = vmatprep.subr.mxu0 0.0
    %1592 = vmatpush1.msra.mxu0 0.0
    %1593 = vmatprep.subr.mxu0 0.0
    %1594 = vmatpush1.msra.mxu0 0.0
    %1595 = vmatprep.subr.mxu0 0.0
    %1596 = vmatpush1.msra.mxu0 0.0
    %1597 = vmatprep.mubr.f32.mxu0 0.0
    %1598 = vmatmul.mubr.f32.gmra.mrb[0].mxu0 %v1531
    %v1599 = vpop.f32.mrb[0].mxu0
    %v1600 = vadd.f32 0.0, %v1599
    %v1601 = vpop.f32.mrb[0].mxu0
    %1602 = vdwg.mxu0
    %v1603 = vadd.f32 %v1112, %v1600
    %v1604 = vxor.u32 %v1603, 2147483648
    %v1605 = vmul.f32 %v1604, 1.442695
    %v1606 = vpow.pop %v1605
    %v1607 = vadd.f32 %v1606, 1.0
    %v1608 = vrcp.pop %v1607
    %v1609 = vmul.f32 1.0, %v1608
    %v1610 = vtanh.pop %v1603
    %v1611 = vmul.f32 %v1609, %v1518
    %1613 = vrot.lane.b32.xlu0 %v1610, 96
    %v1614 = vpop.permute.xlu0 %1613
    %v1616 = vmul.f32 %v1609, %v1614
    %1618 = vrot.lane.b32.xlu0 %v1616, 16
    %v1619 = vpop.permute.xlu0 %1618
    %v1621 = vadd.f32 %v1611, %v1619
    %v1622 = vtanh.pop %v1621
    %1624 = vrot.lane.b32.xlu0 %v1622, 32
    %v1625 = vpop.permute.xlu0 %1624
    %v1627 = vmul.f32 %v1609, %v1625
    %1629 = vrot.lane.b32.xlu0 %v1627, 80
    %v1630 = vpop.permute.xlu0 %1629
    %1632 = vst.msk [vmem:[#allocation3 + $0x4] sm:$0x1] %vm1218, %v1630
    %1633 = vst.msk [vmem:[#allocation3 + $0xb] sm:$0x2] %vm1220, %v1630
    %v1634 = vsel %vm93, %v1630, 0
    %1636 = vmatprep.subr.mxu0 0.0
    %1637 = vmatpush1.msra.mxu0 %v1115
    %1638 = vmatprep.subr.mxu0 0.0
    %1639 = vmatpush1.msra.mxu0 %v1116
    %1640 = vmatprep.subr.mxu0 0.0
    %1641 = vmatpush1.msra.mxu0 0.0
    %1642 = vmatprep.subr.mxu0 0.0
    %1643 = vmatpush1.msra.mxu0 0.0
    %1644 = vmatprep.subr.mxu0 0.0
    %1645 = vmatpush1.msra.mxu0 0.0
    %1646 = vmatprep.subr.mxu0 0.0
    %1647 = vmatpush1.msra.mxu0 0.0
    %1648 = vmatprep.subr.mxu0 0.0
    %1649 = vmatpush1.msra.mxu0 0.0
    %1650 = vmatprep.subr.mxu0 0.0
    %1651 = vmatpush1.msra.mxu0 0.0
    %1652 = vmatprep.subr.mxu0 0.0
    %1653 = vmatpush1.msra.mxu0 0.0
    %1654 = vmatprep.subr.mxu0 0.0
    %1655 = vmatpush1.msra.mxu0 0.0
    %1656 = vmatprep.subr.mxu0 0.0
    %1657 = vmatpush1.msra.mxu0 0.0
    %1658 = vmatprep.subr.mxu0 0.0
    %1659 = vmatpush1.msra.mxu0 0.0
    %1660 = vmatprep.subr.mxu0 0.0
    %1661 = vmatpush1.msra.mxu0 0.0
    %1662 = vmatprep.subr.mxu0 0.0
    %1663 = vmatpush1.msra.mxu0 0.0
    %1664 = vmatprep.subr.mxu0 0.0
    %1665 = vmatpush1.msra.mxu0 0.0
    %1666 = vmatprep.subr.mxu0 0.0
    %1667 = vmatpush1.msra.mxu0 0.0
    %1668 = vmatprep.subr.mxu0 0.0
    %1669 = vmatpush1.msra.mxu0 0.0
    %1670 = vmatprep.subr.mxu0 0.0
    %1671 = vmatpush1.msra.mxu0 0.0
    %1672 = vmatprep.subr.mxu0 0.0
    %1673 = vmatpush1.msra.mxu0 0.0
    %1674 = vmatprep.subr.mxu0 0.0
    %1675 = vmatpush1.msra.mxu0 0.0
    %1676 = vmatprep.subr.mxu0 0.0
    %1677 = vmatpush1.msra.mxu0 0.0
    %1678 = vmatprep.subr.mxu0 0.0
    %1679 = vmatpush1.msra.mxu0 0.0
    %1680 = vmatprep.subr.mxu0 0.0
    %1681 = vmatpush1.msra.mxu0 0.0
    %1682 = vmatprep.subr.mxu0 0.0
    %1683 = vmatpush1.msra.mxu0 0.0
    %1684 = vmatprep.subr.mxu0 0.0
    %1685 = vmatpush1.msra.mxu0 0.0
    %1686 = vmatprep.subr.mxu0 0.0
    %1687 = vmatpush1.msra.mxu0 0.0
    %1688 = vmatprep.subr.mxu0 0.0
    %1689 = vmatpush1.msra.mxu0 0.0
    %1690 = vmatprep.subr.mxu0 0.0
    %1691 = vmatpush1.msra.mxu0 0.0
    %1692 = vmatprep.subr.mxu0 0.0
    %1693 = vmatpush1.msra.mxu0 0.0
    %1694 = vmatprep.subr.mxu0 0.0
    %1695 = vmatpush1.msra.mxu0 0.0
    %1696 = vmatprep.subr.mxu0 0.0
    %1697 = vmatpush1.msra.mxu0 0.0
    %1698 = vmatprep.subr.mxu0 0.0
    %1699 = vmatpush1.msra.mxu0 0.0
    %1700 = vmatprep.mubr.f32.mxu0 0.0
    %1701 = vmatmul.mubr.f32.gmra.mrb[0].mxu0 %v1634
    %v1702 = vpop.f32.mrb[0].mxu0
    %v1703 = vadd.f32 0.0, %v1702
    %v1704 = vpop.f32.mrb[0].mxu0
    %1705 = vdwg.mxu0
    %v1706 = vadd.f32 %v1112, %v1703
    %v1707 = vxor.u32 %v1706, 2147483648
    %v1708 = vmul.f32 %v1707, 1.442695
    %v1709 = vpow.pop %v1708
    %v1710 = vadd.f32 %v1709, 1.0
    %v1711 = vrcp.pop %v1710
    %v1712 = vmul.f32 1.0, %v1711
    %v1713 = vtanh.pop %v1706
    %v1714 = vmul.f32 %v1712, %v1621
    %1716 = vrot.lane.b32.xlu0 %v1713, 96
    %v1717 = vpop.permute.xlu0 %1716
    %v1719 = vmul.f32 %v1712, %v1717
    %1721 = vrot.lane.b32.xlu0 %v1719, 16
    %v1722 = vpop.permute.xlu0 %1721
    %v1724 = vadd.f32 %v1714, %v1722
    %v1725 = vtanh.pop %v1724
    %1727 = vrot.lane.b32.xlu0 %v1725, 32
    %v1728 = vpop.permute.xlu0 %1727
    %v1730 = vmul.f32 %v1712, %v1728
    %1732 = vrot.lane.b32.xlu0 %v1730, 80
    %v1733 = vpop.permute.xlu0 %1732
    %1735 = vst.msk [vmem:[#allocation3 + $0x5] sm:$0x1] %vm1218, %v1733
    %1736 = vst.msk [vmem:[#allocation3 + $0xc] sm:$0x2] %vm1220, %v1733
    %v1737 = vsel %vm93, %v1733, 0
    %1739 = vmatprep.subr.mxu0 0.0
    %1740 = vmatpush1.msra.mxu0 %v1115
    %1741 = vmatprep.subr.mxu0 0.0
    %1742 = vmatpush1.msra.mxu0 %v1116
    %1743 = vmatprep.subr.mxu0 0.0
    %1744 = vmatpush1.msra.mxu0 0.0
    %1745 = vmatprep.subr.mxu0 0.0
    %1746 = vmatpush1.msra.mxu0 0.0
    %1747 = vmatprep.subr.mxu0 0.0
    %1748 = vmatpush1.msra.mxu0 0.0
    %1749 = vmatprep.subr.mxu0 0.0
    %1750 = vmatpush1.msra.mxu0 0.0
    %1751 = vmatprep.subr.mxu0 0.0
    %1752 = vmatpush1.msra.mxu0 0.0
    %1753 = vmatprep.subr.mxu0 0.0
    %1754 = vmatpush1.msra.mxu0 0.0
    %1755 = vmatprep.subr.mxu0 0.0
    %1756 = vmatpush1.msra.mxu0 0.0
    %1757 = vmatprep.subr.mxu0 0.0
    %1758 = vmatpush1.msra.mxu0 0.0
    %1759 = vmatprep.subr.mxu0 0.0
    %1760 = vmatpush1.msra.mxu0 0.0
    %1761 = vmatprep.subr.mxu0 0.0
    %1762 = vmatpush1.msra.mxu0 0.0
    %1763 = vmatprep.subr.mxu0 0.0
    %1764 = vmatpush1.msra.mxu0 0.0
    %1765 = vmatprep.subr.mxu0 0.0
    %1766 = vmatpush1.msra.mxu0 0.0
    %1767 = vmatprep.subr.mxu0 0.0
    %1768 = vmatpush1.msra.mxu0 0.0
    %1769 = vmatprep.subr.mxu0 0.0
    %1770 = vmatpush1.msra.mxu0 0.0
    %1771 = vmatprep.subr.mxu0 0.0
    %1772 = vmatpush1.msra.mxu0 0.0
    %1773 = vmatprep.subr.mxu0 0.0
    %1774 = vmatpush1.msra.mxu0 0.0
    %1775 = vmatprep.subr.mxu0 0.0
    %1776 = vmatpush1.msra.mxu0 0.0
    %1777 = vmatprep.subr.mxu0 0.0
    %1778 = vmatpush1.msra.mxu0 0.0
    %1779 = vmatprep.subr.mxu0 0.0
    %1780 = vmatpush1.msra.mxu0 0.0
    %1781 = vmatprep.subr.mxu0 0.0
    %1782 = vmatpush1.msra.mxu0 0.0
    %1783 = vmatprep.subr.mxu0 0.0
    %1784 = vmatpush1.msra.mxu0 0.0
    %1785 = vmatprep.subr.mxu0 0.0
    %1786 = vmatpush1.msra.mxu0 0.0
    %1787 = vmatprep.subr.mxu0 0.0
    %1788 = vmatpush1.msra.mxu0 0.0
    %1789 = vmatprep.subr.mxu0 0.0
    %1790 = vmatpush1.msra.mxu0 0.0
    %1791 = vmatprep.subr.mxu0 0.0
    %1792 = vmatpush1.msra.mxu0 0.0
    %1793 = vmatprep.subr.mxu0 0.0
    %1794 = vmatpush1.msra.mxu0 0.0
    %1795 = vmatprep.subr.mxu0 0.0
    %1796 = vmatpush1.msra.mxu0 0.0
    %1797 = vmatprep.subr.mxu0 0.0
    %1798 = vmatpush1.msra.mxu0 0.0
    %1799 = vmatprep.subr.mxu0 0.0
    %1800 = vmatpush1.msra.mxu0 0.0
    %1801 = vmatprep.subr.mxu0 0.0
    %1802 = vmatpush1.msra.mxu0 0.0
    %1803 = vmatprep.mubr.f32.mxu0 0.0
    %1804 = vmatmul.mubr.f32.gmra.mrb[0].mxu0 %v1737
    %v1805 = vpop.f32.mrb[0].mxu0
    %v1806 = vadd.f32 0.0, %v1805
    %v1807 = vpop.f32.mrb[0].mxu0
    %1808 = vdwg.mxu0
    %v1809 = vadd.f32 %v1112, %v1806
    %v1810 = vxor.u32 %v1809, 2147483648
    %v1811 = vmul.f32 %v1810, 1.442695
    %v1812 = vpow.pop %v1811
    %v1813 = vadd.f32 %v1812, 1.0
    %v1814 = vrcp.pop %v1813
    %v1815 = vmul.f32 1.0, %v1814
    %v1816 = vtanh.pop %v1809
    %v1817 = vmul.f32 %v1815, %v1724
    %1819 = vrot.lane.b32.xlu0 %v1816, 96
    %v1820 = vpop.permute.xlu0 %1819
    %v1822 = vmul.f32 %v1815, %v1820
    %1824 = vrot.lane.b32.xlu0 %v1822, 16
    %v1825 = vpop.permute.xlu0 %1824
    %v1827 = vadd.f32 %v1817, %v1825
    %v1828 = vtanh.pop %v1827
    %1830 = vrot.lane.b32.xlu0 %v1828, 32
    %v1831 = vpop.permute.xlu0 %1830
    %v1833 = vmul.f32 %v1815, %v1831
    %1835 = vrot.lane.b32.xlu0 %v1833, 80
    %v1836 = vpop.permute.xlu0 %1835
    %1838 = vst.msk [vmem:[#allocation3 + $0x6] sm:$0x1] %vm1218, %v1836
    %1839 = vst.msk [vmem:[#allocation3 + $0xd] sm:$0x2] %vm1220, %v1836
    %v1840 = vsel %vm93, %v1836, 0
    %1842 = vmatprep.subr.mxu0 0.0
    %1843 = vmatpush1.msra.mxu0 %v1115
    %1844 = vmatprep.subr.mxu0 0.0
    %1845 = vmatpush1.msra.mxu0 %v1116
    %1846 = vmatprep.subr.mxu0 0.0
    %1847 = vmatpush1.msra.mxu0 0.0
    %1848 = vmatprep.subr.mxu0 0.0
    %1849 = vmatpush1.msra.mxu0 0.0
    %1850 = vmatprep.subr.mxu0 0.0
    %1851 = vmatpush1.msra.mxu0 0.0
    %1852 = vmatprep.subr.mxu0 0.0
    %1853 = vmatpush1.msra.mxu0 0.0
    %1854 = vmatprep.subr.mxu0 0.0
    %1855 = vmatpush1.msra.mxu0 0.0
    %1856 = vmatprep.subr.mxu0 0.0
    %1857 = vmatpush1.msra.mxu0 0.0
    %1858 = vmatprep.subr.mxu0 0.0
    %1859 = vmatpush1.msra.mxu0 0.0
    %1860 = vmatprep.subr.mxu0 0.0
    %1861 = vmatpush1.msra.mxu0 0.0
    %1862 = vmatprep.subr.mxu0 0.0
    %1863 = vmatpush1.msra.mxu0 0.0
    %1864 = vmatprep.subr.mxu0 0.0
    %1865 = vmatpush1.msra.mxu0 0.0
    %1866 = vmatprep.subr.mxu0 0.0
    %1867 = vmatpush1.msra.mxu0 0.0
    %1868 = vmatprep.subr.mxu0 0.0
    %1869 = vmatpush1.msra.mxu0 0.0
    %1870 = vmatprep.subr.mxu0 0.0
    %1871 = vmatpush1.msra.mxu0 0.0
    %1872 = vmatprep.subr.mxu0 0.0
    %1873 = vmatpush1.msra.mxu0 0.0
    %1874 = vmatprep.subr.mxu0 0.0
    %1875 = vmatpush1.msra.mxu0 0.0
    %1876 = vmatprep.subr.mxu0 0.0
    %1877 = vmatpush1.msra.mxu0 0.0
    %1878 = vmatprep.subr.mxu0 0.0
    %1879 = vmatpush1.msra.mxu0 0.0
    %1880 = vmatprep.subr.mxu0 0.0
    %1881 = vmatpush1.msra.mxu0 0.0
    %1882 = vmatprep.subr.mxu0 0.0
    %1883 = vmatpush1.msra.mxu0 0.0
    %1884 = vmatprep.subr.mxu0 0.0
    %1885 = vmatpush1.msra.mxu0 0.0
    %1886 = vmatprep.subr.mxu0 0.0
    %1887 = vmatpush1.msra.mxu0 0.0
    %1888 = vmatprep.subr.mxu0 0.0
    %1889 = vmatpush1.msra.mxu0 0.0
    %1890 = vmatprep.subr.mxu0 0.0
    %1891 = vmatpush1.msra.mxu0 0.0
    %1892 = vmatprep.subr.mxu0 0.0
    %1893 = vmatpush1.msra.mxu0 0.0
    %1894 = vmatprep.subr.mxu0 0.0
    %1895 = vmatpush1.msra.mxu0 0.0
    %1896 = vmatprep.subr.mxu0 0.0
    %1897 = vmatpush1.msra.mxu0 0.0
    %1898 = vmatprep.subr.mxu0 0.0
    %1899 = vmatpush1.msra.mxu0 0.0
    %1900 = vmatprep.subr.mxu0 0.0
    %1901 = vmatpush1.msra.mxu0 0.0
    %1902 = vmatprep.subr.mxu0 0.0
    %1903 = vmatpush1.msra.mxu0 0.0
    %1904 = vmatprep.subr.mxu0 0.0
    %1905 = vmatpush1.msra.mxu0 0.0
    %1906 = vmatprep.mubr.f32.mxu0 0.0
    %1907 = vmatmul.mubr.f32.gmra.mrb[0].mxu0 %v1840
    %v1908 = vpop.f32.mrb[0].mxu0
    %v1909 = vadd.f32 0.0, %v1908
    %v1910 = vpop.f32.mrb[0].mxu0
    %1911 = vdwg.mxu0
    %v1912 = vadd.f32 %v1112, %v1909
    %v1913 = vxor.u32 %v1912, 2147483648
    %v1914 = vmul.f32 %v1913, 1.442695
    %v1915 = vpow.pop %v1914
    %v1916 = vadd.f32 %v1915, 1.0
    %v1917 = vrcp.pop %v1916
    %v1918 = vmul.f32 1.0, %v1917
    %v1919 = vtanh.pop %v1912
    %v1920 = vmul.f32 %v1918, %v1827
    %1922 = vrot.lane.b32.xlu0 %v1919, 96
    %v1923 = vpop.permute.xlu0 %1922
    %v1925 = vmul.f32 %v1918, %v1923
    %1927 = vrot.lane.b32.xlu0 %v1925, 16
    %v1928 = vpop.permute.xlu0 %1927
    %v1930 = vadd.f32 %v1920, %v1928
    %v1931 = vtanh.pop %v1930
    %1933 = vrot.lane.b32.xlu0 %v1931, 32
    %v1934 = vpop.permute.xlu0 %1933
    %v1936 = vmul.f32 %v1918, %v1934
    %1938 = vrot.lane.b32.xlu0 %v1936, 80
    %v1939 = vpop.permute.xlu0 %1938
    %1941 = vst.msk [vmem:[#allocation3 + $0x7] sm:$0x1] %vm1218, %v1939
    %1942 = vst.msk [vmem:[#allocation3 + $0xe] sm:$0x2] %vm1220, %v1939
    %v1943 = vld [vmem:[#allocation3] sm:$0xff]
    %v1944 = vld [vmem:[#allocation3 + $0x8] sm:$0xff]
    %1945 = vst.msk [vmem:[#allocation12] sm:$0xff] %vm93, %v1943
    %1946 = vst.msk [vmem:[#allocation12 + $0x8] sm:$0xff] %vm93, %v1944
    // Predicated region
    $region46: #{tpu_custom_call.1} parent=1 // pred_check
      _
    $region47: #{tpu_custom_call.1} parent=1 // pred_check_branch
      %1948 = sbr.rel (0) target = $region49
    $region48: #{tpu_custom_call.1} parent=1 // pred_region
      %s1950 = ssub.s32 256, 256
      %1951 = vsyncadd [#allocation6], %s1950
      %s1952 = sshll.u32 [#allocation12], 4
      %s1953 = int_to_ptr.vmem [resolvable:$true] %s1952
      %1958 = dma.vmem_to_hbm [thread:$0]  %s1953, 256, %s7, [#allocation6], 128, 128, 8
    $region49: #{tpu_custom_call.1} parent=1 // pred_fallthru
      _
    // Predicated region
    $region50: #{tpu_custom_call.1} parent=1 // pred_check
      _
    $region51: #{tpu_custom_call.1} parent=1 // pred_check_branch
      %1960 = sbr.rel (0) target = $region53
    $region52: #{tpu_custom_call.1} parent=1 // pred_region
      %1961 = dma.done [#allocation6], 256
    $region53: #{tpu_custom_call.1} parent=1 // pred_fallthru
      _
    %1962 = vsyncpa [#allocation5], 1
    %1963 = vsyncpa [#allocation8], 1
    %1964 = vsyncpa [#allocation11], 1
    %1965 = vsyncpa [#allocation6], 1

</llo_original>
